<compile_context>
chip_gen: v7x
topology: tpu7x:2x2x1
jax: 0.10.0
libtpu: 0.0.40
codegen_flags: <defaults>
</compile_context>

<pallas_src>
import functools

import jax
import jax.numpy as jnp
from jax import lax
from jax.experimental import pallas as pl
from jax.experimental.pallas import tpu as pltpu


INPUT_DIMS = 784
NO_HIDDEN_LAYERS = 2         # forward applies hidden[0] (Linear) + hidden[1] (BatchNorm1d)
HIDDEN_UNITS = 32            # kept unpadded (don't chase MXU shape; kernel is mem-bound)
OUT_CLASSES = 10
OUT_PAD = 128                # 10 padded to 128 lanes -> unmasked vst on the output
BN_EPS = 1e-5


def fashion_classifier_kernel(x_ref, w1_ref, b1_ref, gamma_ref, beta_ref,
                              wo_ref, bo_ref, o_ref,
                              h_scratch, sum_ref, sumsq_ref,
                              *, batch_size, tb):
    p = pl.program_id(0)     # 0: accumulate pass, 1: finalize pass
    i = pl.program_id(1)     # batch tile index
    off = pl.multiple_of(i * tb, tb)

    @pl.when((p == 0) & (i == 0))
    def _init():
        sum_ref[...] = jnp.zeros_like(sum_ref)
        sumsq_ref[...] = jnp.zeros_like(sumsq_ref)

    # ---- pass 0 (per batch tile): hidden[0] Linear(784->H) + ReLU ----------
    @pl.when(p == 0)
    def _accumulate():
        h = jnp.dot(x_ref[...], w1_ref[...],
                    preferred_element_type=jnp.float32)       # bf16 in, f32 acc
        h = jnp.maximum(h + b1_ref[...], 0.0)                 # (tb, H) f32

        # Mask ragged-last-tile padding rows out of the BatchNorm statistics
        # (jnp.where so unspecified OOB reads can never contaminate the sums).
        # NOTE: E[x^2]-E[x]^2 in f32 can cancel for very large batches; switch
        # to a shifted/Welford accumulation if B grows into the millions.
        row = i * tb + lax.broadcasted_iota(jnp.int32, h.shape, 0)
        hm = jnp.where(row < batch_size, h, 0.0)
        sum_ref[...] += jnp.sum(hm, axis=0, keepdims=True)
        sumsq_ref[...] += jnp.sum(hm * hm, axis=0, keepdims=True)

        # Stash this tile's activations (bf16); x is only streamed from HBM once.
        h_scratch[pl.ds(off, tb), :] = h.astype(jnp.bfloat16)

    # ---- pass 1 (per batch tile): BatchNorm1d (full batch) + ReLU + out ----
    @pl.when(p == 1)
    def _finalize():
        inv_b = 1.0 / batch_size
        mean = sum_ref[...] * inv_b                           # (1, H)
        var = sumsq_ref[...] * inv_b - mean * mean            # biased variance
        inv_std = lax.rsqrt(var + BN_EPS)
        h = h_scratch[pl.ds(off, tb), :].astype(jnp.float32)  # (tb, H)
        h2 = (h - mean) * inv_std * gamma_ref[...] + beta_ref[...]
        h2 = jnp.maximum(h2, 0.0)
        out = jnp.dot(h2.astype(jnp.bfloat16), wo_ref[...],
                      preferred_element_type=jnp.float32) + bo_ref[...]
        o_ref[...] = out.astype(o_ref.dtype)                  # streamed bf16 tile


def _vmem_limit_bytes(b_pad, tb):
    """Scoped-VMEM limit sized from the real footprint, capped per generation."""
    lane = 128                                  # sub-128 last dims lane-pad in VMEM
    need = (b_pad * lane * 2                    # h_scratch (bf16, lane-padded)
            + 2 * tb * INPUT_DIMS * 2           # x double buffer (bf16)
            + 2 * tb * OUT_PAD * 2              # output double buffer (bf16)
            + INPUT_DIMS * lane * 2             # w1 resident (bf16, lane-padded)
            + HIDDEN_UNITS * OUT_PAD * 2        # wo resident
            + 16 * lane * 4                     # biases / gamma / beta / accumulators
            + (1 << 20))                        # Mosaic internal scratch slack
    phys = 64 * 1024 * 1024                     # conservative default (v7x per-TC)
    try:
        phys = int(getattr(pltpu.get_tpu_info(), "vmem_capacity_bytes", phys))
    except Exception:
        pass
    return int(min(max(2 * need, 16 * 1024 * 1024), int(0.75 * phys)))


def fashion_classifier_forward(x, kernel_params, *, tb=512):
    """x: (B, 784), ideally already bf16 from the producer.
    Returns (B, OUT_CLASSES) bf16 logits."""
    assert tb % 8 == 0
    B, K = x.shape
    assert K == INPUT_DIMS
    if x.dtype != jnp.bfloat16:
        # Fallback only — producers should hand the kernel bf16 directly so no
        # extra HBM pass over x is spent on the cast.
        x = x.astype(jnp.bfloat16)

    nt = pl.cdiv(B, tb)
    b_pad = nt * tb
    w1, b1, gamma, beta, wo, bo = kernel_params

    const = lambda p, i: (0, 0)
    resident = dict(pipeline_mode=pl.Buffered(1))   # never-changing blocks: 1 buffer
    grid_spec = pltpu.PrefetchScalarGridSpec(
        num_scalar_prefetch=0,
        grid=(2, nt),
        in_specs=[
            # x: streamed in pass 0; pinned to its last block in pass 1 so it
            # is not re-DMA'd (pass 1 only reads h_scratch).
            pl.BlockSpec((tb, INPUT_DIMS),
                         lambda p, i: ((1 - p) * i + p * (nt - 1), 0)),
            pl.BlockSpec((INPUT_DIMS, HIDDEN_UNITS), const, **resident),   # w1
            pl.BlockSpec((1, HIDDEN_UNITS), const, **resident),            # b1
            pl.BlockSpec((1, HIDDEN_UNITS), const, **resident),            # gamma
            pl.BlockSpec((1, HIDDEN_UNITS), const, **resident),            # beta
            pl.BlockSpec((HIDDEN_UNITS, OUT_PAD), const, **resident),      # wo
            pl.BlockSpec((1, OUT_PAD), const, **resident),                 # bo
        ],
        # Output: parked on block 0 (never written) during pass 0, streamed
        # tile-by-tile during pass 1.
        out_specs=pl.BlockSpec((tb, OUT_PAD), lambda p, i: (p * i, 0)),
        scratch_shapes=[
            pltpu.VMEM((b_pad, HIDDEN_UNITS), jnp.bfloat16),   # h activations
            pltpu.VMEM((1, HIDDEN_UNITS), jnp.float32),        # sum(h)
            pltpu.VMEM((1, HIDDEN_UNITS), jnp.float32),        # sum(h*h)
        ],
    )

    flops = 2 * b_pad * INPUT_DIMS * HIDDEN_UNITS + 2 * b_pad * HIDDEN_UNITS * OUT_PAD
    bytes_accessed = (B * INPUT_DIMS * 2                       # x (bf16, read once)
                      + INPUT_DIMS * HIDDEN_UNITS * 2
                      + HIDDEN_UNITS * OUT_PAD * 2
                      + (3 * HIDDEN_UNITS + OUT_PAD) * 4
                      + B * OUT_PAD * 2)                       # output (bf16)

    out = pl.pallas_call(
        functools.partial(fashion_classifier_kernel, batch_size=B, tb=tb),
        out_shape=jax.ShapeDtypeStruct((B, OUT_PAD), jnp.bfloat16),
        grid_spec=grid_spec,
        compiler_params=pltpu.CompilerParams(
            # TODO(synk): on v7x, split the batch axis across the 2 TensorCores
            # (core_map / CORE_PARALLEL) with per-core partial BN sums combined
            # via CMEM + pltpu.core_barrier before the finalize pass; a naive
            # "parallel" flip here would break the per-core scratch accumulators.
            dimension_semantics=("arbitrary", "arbitrary"),
            vmem_limit_bytes=_vmem_limit_bytes(b_pad, tb),
        ),
        cost_estimate=pl.CostEstimate(flops=flops,
                                      transcendentals=nt * HIDDEN_UNITS,
                                      bytes_accessed=bytes_accessed),
    )(x, w1, b1, gamma, beta, wo, bo)

    return out[:, :OUT_CLASSES]


def init_params(key):
    """Logical (unpadded, f32) params mimicking the PyTorch module's init.

    nn.Linear(in, out): weight (out, in), bias (out,) ~ U(-1/sqrt(in), +).
    Stored pre-transposed as (in, out).  nn.BatchNorm1d(H): gamma=1, beta=0.
    """
    k1, k2, k3, k4 = jax.random.split(key, 4)
    lim1 = 1.0 / jnp.sqrt(INPUT_DIMS)
    w1 = jax.random.uniform(k1, (INPUT_DIMS, HIDDEN_UNITS),
                            minval=-lim1, maxval=lim1, dtype=jnp.float32)
    b1 = jax.random.uniform(k2, (HIDDEN_UNITS,),
                            minval=-lim1, maxval=lim1, dtype=jnp.float32)
    gamma = jnp.ones((HIDDEN_UNITS,), dtype=jnp.float32)
    beta = jnp.zeros((HIDDEN_UNITS,), dtype=jnp.float32)
    limo = 1.0 / jnp.sqrt(HIDDEN_UNITS)
    wo = jax.random.uniform(k3, (HIDDEN_UNITS, OUT_CLASSES),
                            minval=-limo, maxval=limo, dtype=jnp.float32)
    bo = jax.random.uniform(k4, (OUT_CLASSES,),
                            minval=-limo, maxval=limo, dtype=jnp.float32)
    return (w1, b1, gamma, beta, wo, bo)


def prepare_params(params):
    """Cast/pad logical params into the kernel's bf16/f32 layout (no K padding)."""
    w1, b1, gamma, beta, wo, bo = params
    w1_p = w1.astype(jnp.bfloat16)                                    # (784, 32)
    b1_p = b1.reshape(1, HIDDEN_UNITS).astype(jnp.float32)
    gamma_p = gamma.reshape(1, HIDDEN_UNITS).astype(jnp.float32)
    beta_p = beta.reshape(1, HIDDEN_UNITS).astype(jnp.float32)
    wo_p = jnp.zeros((HIDDEN_UNITS, OUT_PAD), jnp.bfloat16)
    wo_p = wo_p.at[:, :OUT_CLASSES].set(wo.astype(jnp.bfloat16))
    bo_p = jnp.zeros((1, OUT_PAD), jnp.float32)
    bo_p = bo_p.at[0, :OUT_CLASSES].set(bo)
    return (w1_p, b1_p, gamma_p, beta_p, wo_p, bo_p)


def reference_forward(x, params):
    """Pure-JAX reference mirroring the kernel's precision (bf16 MXU, f32 BN)."""
    w1, b1, gamma, beta, wo, bo = params
    h = jnp.dot(x.astype(jnp.bfloat16), w1.astype(jnp.bfloat16),
                preferred_element_type=jnp.float32) + b1
    h = jnp.maximum(h, 0.0)
    mean = jnp.mean(h, axis=0, keepdims=True)
    var = jnp.mean((h - mean) ** 2, axis=0, keepdims=True)      # biased var
    h2 = (h - mean) * lax.rsqrt(var + BN_EPS) * gamma + beta
    h2 = jnp.maximum(h2, 0.0)
    return jnp.dot(h2.astype(jnp.bfloat16), wo.astype(jnp.bfloat16),
                   preferred_element_type=jnp.float32) + bo


if __name__ == "__main__":
    key = jax.random.PRNGKey(0)
    kx, kp = jax.random.split(key)

    B = 100                                     # small demo batch (not a tile multiple)
    x = jax.random.normal(kx, (B, INPUT_DIMS), dtype=jnp.float32)
    params = init_params(kp)
    kernel_params = prepare_params(params)

    # Producers hand the kernel bf16 activations directly (no wrapper pad/cast
    # pass over HBM); the demo does the cast here, outside the kernel path.
    x_bf16 = x.astype(jnp.bfloat16)

    # Small tile so the 2-pass grid, ragged-last-tile masking and streamed
    # output paths are all exercised; production default is tb=512.
    out = fashion_classifier_forward(x_bf16, kernel_params, tb=32)
    out = jax.block_until_ready(out)

    ref = reference_forward(x, params)
    assert out.shape == (B, OUT_CLASSES)
    out_f32 = out.astype(jnp.float32)
    max_err = float(jnp.max(jnp.abs(out_f32 - ref)))
    assert jnp.allclose(out_f32, ref, atol=5e-2, rtol=5e-2), f"max_err={max_err}"

    print("KERNEL_OK")
</pallas_src>

<mosaic_0001>
module attributes {stable_mosaic.version = 11 : i64} {
  func.func @fashion_classifier_kernel(%arg0: i32, %arg1: i32, %arg2: memref<32x784xbf16, #tpu.memory_space<vmem>>, %arg3: memref<784x32xbf16, #tpu.memory_space<vmem>>, %arg4: memref<1x32xf32, #tpu.memory_space<vmem>>, %arg5: memref<1x32xf32, #tpu.memory_space<vmem>>, %arg6: memref<1x32xf32, #tpu.memory_space<vmem>>, %arg7: memref<32x128xbf16, #tpu.memory_space<vmem>>, %arg8: memref<1x128xf32, #tpu.memory_space<vmem>>, %arg9: memref<32x128xbf16, #tpu.memory_space<vmem>>, %arg10: memref<128x32xbf16, #tpu.memory_space<vmem>>, %arg11: memref<1x32xf32, #tpu.memory_space<vmem>>, %arg12: memref<1x32xf32, #tpu.memory_space<vmem>>) attributes {dimension_semantics = [#tpu.dimension_semantics<arbitrary>, #tpu.dimension_semantics<arbitrary>], iteration_bounds = array<i64: 2, 4>, scalar_prefetch = 0 : i64, scratch_operands = 3 : i64, tpu.core_type = #tpu.core_type<tc>, window_params = [{transform_indices = @transform_0, window_bounds = array<i64: 32, 784>}, {pipeline_mode = #tpu.pipeline_mode<synchronous>, transform_indices = @transform_1, window_bounds = array<i64: 784, 32>}, {pipeline_mode = #tpu.pipeline_mode<synchronous>, transform_indices = @transform_2, window_bounds = array<i64: 1, 32>}, {pipeline_mode = #tpu.pipeline_mode<synchronous>, transform_indices = @transform_3, window_bounds = array<i64: 1, 32>}, {pipeline_mode = #tpu.pipeline_mode<synchronous>, transform_indices = @transform_4, window_bounds = array<i64: 1, 32>}, {pipeline_mode = #tpu.pipeline_mode<synchronous>, transform_indices = @transform_5, window_bounds = array<i64: 32, 128>}, {pipeline_mode = #tpu.pipeline_mode<synchronous>, transform_indices = @transform_6, window_bounds = array<i64: 1, 128>}, {transform_indices = @transform_7, window_bounds = array<i64: 32, 128>}]} {
    %c32_i32 = arith.constant 32 : i32
    %0 = arith.muli %arg1, %c32_i32 : i32
    %1 = tpu.assume_multiple %0, 32 : i32
    %c0_i32 = arith.constant 0 : i32
    %2 = arith.cmpi eq, %arg0, %c0_i32 : i32
    %c0_i32_0 = arith.constant 0 : i32
    %3 = arith.cmpi eq, %arg1, %c0_i32_0 : i32
    %4 = arith.andi %2, %3 : i1
    %5 = arith.extui %4 : i1 to i32
    %c0_i32_1 = arith.constant 0 : i32
    %6 = arith.cmpi ne, %5, %c0_i32_1 : i32
    scf.if %6 {
      %cst = arith.constant 0.000000e+00 : f32
      %13 = vector.broadcast %cst : f32 to vector<1x32xf32>
      %c0 = arith.constant 0 : index
      %c0_5 = arith.constant 0 : index
      %14 = vector.load %arg11[%c0, %c0_5] : memref<1x32xf32, #tpu.memory_space<vmem>>, vector<1x32xf32>
      tpu.vector_store %arg11[%c0, %c0_5], %13 {strides = array<i32>} : memref<1x32xf32, #tpu.memory_space<vmem>>, vector<1x32xf32>,
      %cst_6 = arith.constant 0.000000e+00 : f32
      %15 = vector.broadcast %cst_6 : f32 to vector<1x32xf32>
      %c0_7 = arith.constant 0 : index
      %c0_8 = arith.constant 0 : index
      %16 = vector.load %arg12[%c0_7, %c0_8] : memref<1x32xf32, #tpu.memory_space<vmem>>, vector<1x32xf32>
      tpu.vector_store %arg12[%c0_7, %c0_8], %15 {strides = array<i32>} : memref<1x32xf32, #tpu.memory_space<vmem>>, vector<1x32xf32>,
    } else {
    }
    %c0_i32_2 = arith.constant 0 : i32
    %7 = arith.cmpi eq, %arg0, %c0_i32_2 : i32
    %8 = arith.extui %7 : i1 to i32
    %c0_i32_3 = arith.constant 0 : i32
    %9 = arith.cmpi ne, %8, %c0_i32_3 : i32
    scf.if %9 {
      %c0 = arith.constant 0 : index
      %c0_5 = arith.constant 0 : index
      %13 = vector.load %arg2[%c0, %c0_5] : memref<32x784xbf16, #tpu.memory_space<vmem>>, vector<32x784xbf16>
      %c0_6 = arith.constant 0 : index
      %c0_7 = arith.constant 0 : index
      %14 = vector.load %arg3[%c0_6, %c0_7] : memref<784x32xbf16, #tpu.memory_space<vmem>>, vector<784x32xbf16>
      %cst = arith.constant dense<0.000000e+00> : vector<32x32xf32>
      %15 = tpu.matmul %13, %14, %cst {dimension_numbers = #tpu.dot_dimension_numbers<[1], [0], [0], [1], [0, 0, 1, 1], [], []>} : vector<32x784xbf16>, vector<784x32xbf16>, vector<32x32xf32> -> vector<32x32xf32>
      %c0_8 = arith.constant 0 : index
      %c0_9 = arith.constant 0 : index
      %16 = vector.load %arg4[%c0_8, %c0_9] : memref<1x32xf32, #tpu.memory_space<vmem>>, vector<1x32xf32>
      %17 = vector.broadcast %16 : vector<1x32xf32> to vector<32x32xf32>
      %18 = arith.addf %15, %17 : vector<32x32xf32>
      %cst_10 = arith.constant 0.000000e+00 : f32
      %19 = vector.broadcast %cst_10 : f32 to vector<32x32xf32>
      %20 = arith.maximumf %18, %19 : vector<32x32xf32>
      %c32_i32_11 = arith.constant 32 : i32
      %21 = arith.muli %arg1, %c32_i32_11 : i32
      %22 = tpu.iota {dimensions = array<i32: 0>} : vector<32x32xi32>
      %23 = vector.broadcast %21 : i32 to vector<32x32xi32>
      %24 = arith.addi %23, %22 : vector<32x32xi32>
      %c100_i32 = arith.constant 100 : i32
      %25 = vector.broadcast %c100_i32 : i32 to vector<32x32xi32>
      %26 = arith.cmpi slt, %24, %25 : vector<32x32xi32>
      %cst_12 = arith.constant 0.000000e+00 : f32
      %27 = vector.broadcast %cst_12 : f32 to vector<32x32xf32>
      %28 = arith.select %26, %20, %27 : vector<32x32xi1>, vector<32x32xf32>
      %c0_13 = arith.constant 0 : index
      %c0_14 = arith.constant 0 : index
      %29 = vector.load %arg11[%c0_13, %c0_14] : memref<1x32xf32, #tpu.memory_space<vmem>>, vector<1x32xf32>
      %cst_15 = arith.constant dense<0.000000e+00> : vector<32xf32>
      %30 = vector.multi_reduction <add>, %28, %cst_15 [0] : vector<32x32xf32> to vector<32xf32>
      %31 = vector.shape_cast %30 : vector<32xf32> to vector<1x32xf32>
      %32 = arith.addf %29, %31 : vector<1x32xf32>
      %c0_16 = arith.constant 0 : index
      %c0_17 = arith.constant 0 : index
      %33 = vector.load %arg11[%c0_16, %c0_17] : memref<1x32xf32, #tpu.memory_space<vmem>>, vector<1x32xf32>
      tpu.vector_store %arg11[%c0_16, %c0_17], %32 {strides = array<i32>} : memref<1x32xf32, #tpu.memory_space<vmem>>, vector<1x32xf32>,
      %c0_18 = arith.constant 0 : index
      %c0_19 = arith.constant 0 : index
      %34 = vector.load %arg12[%c0_18, %c0_19] : memref<1x32xf32, #tpu.memory_space<vmem>>, vector<1x32xf32>
      %35 = arith.mulf %28, %28 : vector<32x32xf32>
      %cst_20 = arith.constant dense<0.000000e+00> : vector<32xf32>
      %36 = vector.multi_reduction <add>, %35, %cst_20 [0] : vector<32x32xf32> to vector<32xf32>
      %37 = vector.shape_cast %36 : vector<32xf32> to vector<1x32xf32>
      %38 = arith.addf %34, %37 : vector<1x32xf32>
      %c0_21 = arith.constant 0 : index
      %c0_22 = arith.constant 0 : index
      %39 = vector.load %arg12[%c0_21, %c0_22] : memref<1x32xf32, #tpu.memory_space<vmem>>, vector<1x32xf32>
      tpu.vector_store %arg12[%c0_21, %c0_22], %38 {strides = array<i32>} : memref<1x32xf32, #tpu.memory_space<vmem>>, vector<1x32xf32>,
      %40 = arith.truncf %20 : vector<32x32xf32> to vector<32x32xbf16>
      %41 = arith.index_cast %1 : i32 to index
      %c0_23 = arith.constant 0 : index
      %42 = vector.load %arg10[%41, %c0_23] : memref<128x32xbf16, #tpu.memory_space<vmem>>, vector<32x32xbf16>
      tpu.vector_store %arg10[%41, %c0_23], %40 {strides = array<i32>} : memref<128x32xbf16, #tpu.memory_space<vmem>>, vector<32x32xbf16>,
    } else {
    }
    %c1_i32 = arith.constant 1 : i32
    %10 = arith.cmpi eq, %arg0, %c1_i32 : i32
    %11 = arith.extui %10 : i1 to i32
    %c0_i32_4 = arith.constant 0 : i32
    %12 = arith.cmpi ne, %11, %c0_i32_4 : i32
    scf.if %12 {
      %c0 = arith.constant 0 : index
      %c0_5 = arith.constant 0 : index
      %13 = vector.load %arg11[%c0, %c0_5] : memref<1x32xf32, #tpu.memory_space<vmem>>, vector<1x32xf32>
      %cst = arith.constant 0.00999999977 : f32
      %14 = vector.broadcast %cst : f32 to vector<1x32xf32>
      %15 = arith.mulf %13, %14 : vector<1x32xf32>
      %c0_6 = arith.constant 0 : index
      %c0_7 = arith.constant 0 : index
      %16 = vector.load %arg12[%c0_6, %c0_7] : memref<1x32xf32, #tpu.memory_space<vmem>>, vector<1x32xf32>
      %cst_8 = arith.constant 0.00999999977 : f32
      %17 = vector.broadcast %cst_8 : f32 to vector<1x32xf32>
      %18 = arith.mulf %16, %17 : vector<1x32xf32>
      %19 = arith.mulf %15, %15 : vector<1x32xf32>
      %20 = arith.subf %18, %19 : vector<1x32xf32>
      %cst_9 = arith.constant 9.99999974E-6 : f32
      %21 = vector.broadcast %cst_9 : f32 to vector<1x32xf32>
      %22 = arith.addf %20, %21 : vector<1x32xf32>
      %23 = math.rsqrt %22 : vector<1x32xf32>
      %24 = arith.index_cast %1 : i32 to index
      %c0_10 = arith.constant 0 : index
      %25 = vector.load %arg10[%24, %c0_10] : memref<128x32xbf16, #tpu.memory_space<vmem>>, vector<32x32xbf16>
      %26 = arith.extf %25 : vector<32x32xbf16> to vector<32x32xf32>
      %27 = vector.broadcast %15 : vector<1x32xf32> to vector<32x32xf32>
      %28 = arith.subf %26, %27 : vector<32x32xf32>
      %29 = vector.broadcast %23 : vector<1x32xf32> to vector<32x32xf32>
      %30 = arith.mulf %28, %29 : vector<32x32xf32>
      %c0_11 = arith.constant 0 : index
      %c0_12 = arith.constant 0 : index
      %31 = vector.load %arg5[%c0_11, %c0_12] : memref<1x32xf32, #tpu.memory_space<vmem>>, vector<1x32xf32>
      %32 = vector.broadcast %31 : vector<1x32xf32> to vector<32x32xf32>
      %33 = arith.mulf %30, %32 : vector<32x32xf32>
      %c0_13 = arith.constant 0 : index
      %c0_14 = arith.constant 0 : index
      %34 = vector.load %arg6[%c0_13, %c0_14] : memref<1x32xf32, #tpu.memory_space<vmem>>, vector<1x32xf32>
      %35 = vector.broadcast %34 : vector<1x32xf32> to vector<32x32xf32>
      %36 = arith.addf %33, %35 : vector<32x32xf32>
      %cst_15 = arith.constant 0.000000e+00 : f32
      %37 = vector.broadcast %cst_15 : f32 to vector<32x32xf32>
      %38 = arith.maximumf %36, %37 : vector<32x32xf32>
      %39 = arith.truncf %38 : vector<32x32xf32> to vector<32x32xbf16>
      %c0_16 = arith.constant 0 : index
      %c0_17 = arith.constant 0 : index
      %40 = vector.load %arg7[%c0_16, %c0_17] : memref<32x128xbf16, #tpu.memory_space<vmem>>, vector<32x128xbf16>
      %cst_18 = arith.constant dense<0.000000e+00> : vector<32x128xf32>
      %41 = tpu.matmul %39, %40, %cst_18 {dimension_numbers = #tpu.dot_dimension_numbers<[1], [0], [0], [1], [0, 0, 1, 1], [], []>} : vector<32x32xbf16>, vector<32x128xbf16>, vector<32x128xf32> -> vector<32x128xf32>
      %c0_19 = arith.constant 0 : index
      %c0_20 = arith.constant 0 : index
      %42 = vector.load %arg8[%c0_19, %c0_20] : memref<1x128xf32, #tpu.memory_space<vmem>>, vector<1x128xf32>
      %43 = vector.broadcast %42 : vector<1x128xf32> to vector<32x128xf32>
      %44 = arith.addf %41, %43 : vector<32x128xf32>
      %45 = arith.truncf %44 : vector<32x128xf32> to vector<32x128xbf16>
      %c0_21 = arith.constant 0 : index
      %c0_22 = arith.constant 0 : index
      %46 = vector.load %arg9[%c0_21, %c0_22] : memref<32x128xbf16, #tpu.memory_space<vmem>>, vector<32x128xbf16>
      tpu.vector_store %arg9[%c0_21, %c0_22], %45 {strides = array<i32>} : memref<32x128xbf16, #tpu.memory_space<vmem>>, vector<32x128xbf16>,
    } else {
    }
    return
  }
  func.func @transform_0(%arg0: i32, %arg1: i32) -> (i32, i32) {
    %c1_i32 = arith.constant 1 : i32
    %0 = arith.subi %c1_i32, %arg0 : i32
    %1 = arith.muli %0, %arg1 : i32
    %c3_i32 = arith.constant 3 : i32
    %2 = arith.muli %arg0, %c3_i32 : i32
    %3 = arith.addi %1, %2 : i32
    %c0_i32 = arith.constant 0 : i32
    %c0_i32_0 = arith.constant 0 : i32
    return %3, %c0_i32 : i32, i32
  }
  func.func @transform_1(%arg0: i32, %arg1: i32) -> (i32, i32) {
    %c0_i32 = arith.constant 0 : i32
    %c0_i32_0 = arith.constant 0 : i32
    %c0_i32_1 = arith.constant 0 : i32
    return %c0_i32, %c0_i32_0 : i32, i32
  }
  func.func @transform_2(%arg0: i32, %arg1: i32) -> (i32, i32) {
    %c0_i32 = arith.constant 0 : i32
    %c0_i32_0 = arith.constant 0 : i32
    %c0_i32_1 = arith.constant 0 : i32
    return %c0_i32, %c0_i32_0 : i32, i32
  }
  func.func @transform_3(%arg0: i32, %arg1: i32) -> (i32, i32) {
    %c0_i32 = arith.constant 0 : i32
    %c0_i32_0 = arith.constant 0 : i32
    %c0_i32_1 = arith.constant 0 : i32
    return %c0_i32, %c0_i32_0 : i32, i32
  }
  func.func @transform_4(%arg0: i32, %arg1: i32) -> (i32, i32) {
    %c0_i32 = arith.constant 0 : i32
    %c0_i32_0 = arith.constant 0 : i32
    %c0_i32_1 = arith.constant 0 : i32
    return %c0_i32, %c0_i32_0 : i32, i32
  }
  func.func @transform_5(%arg0: i32, %arg1: i32) -> (i32, i32) {
    %c0_i32 = arith.constant 0 : i32
    %c0_i32_0 = arith.constant 0 : i32
    %c0_i32_1 = arith.constant 0 : i32
    return %c0_i32, %c0_i32_0 : i32, i32
  }
  func.func @transform_6(%arg0: i32, %arg1: i32) -> (i32, i32) {
    %c0_i32 = arith.constant 0 : i32
    %c0_i32_0 = arith.constant 0 : i32
    %c0_i32_1 = arith.constant 0 : i32
    return %c0_i32, %c0_i32_0 : i32, i32
  }
  func.func @transform_7(%arg0: i32, %arg1: i32) -> (i32, i32) {
    %0 = arith.muli %arg0, %arg1 : i32
    %c0_i32 = arith.constant 0 : i32
    %c0_i32_0 = arith.constant 0 : i32
    return %0, %c0_i32 : i32, i32
  }
}

</mosaic_0001>

<llo_original>
// kernel: tpu_custom_call.1
$region0: #{tpu_custom_call.1}
  #allocation0 [shape = 'u32[]', space=smem, size = 0x4, offset = 0x4, fixed_abs, tag = 'smem constant byte address 0x4 - core index']
  #allocation1 [shape = 'u32[144,128]{1,0:T(1,128)}', space=vmem, size = 0x12000, scoped, tag = 'internal scratch']
  #allocation2 [shape = 'bf16[128,32]{1,0:T(16,128)(2,1)}', space=vmem, size = 0x8000, scoped, tag = 'scratch operand']
  #allocation3 [shape = 'f32[1,32]{1,0:T(1,128)}', space=vmem, size = 0x200, scoped, tag = 'scratch operand']
  #allocation4 [shape = 'f32[1,32]{1,0:T(1,128)}', space=vmem, size = 0x200, scoped, tag = 'scratch operand']
  %s0 = inlined_call_operand.vmem [shape: bf16[100,784], index: 0, kind: input, shape index: {}]
  %s1 = inlined_call_operand.vmem [shape: bf16[784,32], index: 1, kind: input, shape index: {}]
  %s2 = inlined_call_operand.vmem [shape: f32[1,32], index: 2, kind: input, shape index: {}]
  %s3 = inlined_call_operand.vmem [shape: f32[1,32], index: 3, kind: input, shape index: {}]
  %s4 = inlined_call_operand.vmem [shape: f32[1,32], index: 4, kind: input, shape index: {}]
  %s5 = inlined_call_operand.vmem [shape: bf16[32,128], index: 5, kind: input, shape index: {}]
  %s6 = inlined_call_operand.vmem [shape: f32[1,128], index: 6, kind: input, shape index: {}]
  %s7 = inlined_call_operand.hbm [shape: bf16[100,128], index: 7, kind: output, shape index: {}]
  %s8 = sld [smem:[#allocation0]]
  $region73: #{tpu_custom_call.1} parent=0
    _
  %s10 = ssub.s32 1, %s8
  %s11 = scalar_select 0, %s10, %s8
  $region1: #{tpu_custom_call.1} parent=0
    #allocation5 [shape = 'u8[16384]{0}', space=vmem, size = 0x4000, scoped, tag = 'output window, operand 0']
    #allocation6 [shape = 's32[2]{0}', space=sflag, size = 0x8, scoped, tag = 'scoped memory for tpu_custom_call.1']
    %12 = vsyncpa [#allocation6], 0
    %s13 = scalar_lea.sflag [#allocation6], 1
    %14 = vsyncpa %s13, 0
    loop: start=0, step=1, limit=10
    $region2: #{tpu_custom_call.1} parent=1 // loop_pre_header
      _
    $region3: #{tpu_custom_call.1} parent=1 // loop_header
      %s16 = sphi 0, %s20
      %p17 = scmp.ge.s32.totalorder %s16, 10
      %s23 = sphi 0, %s35
      %s24 = sphi 0, %s31
      %s25 = sphi 0, %s23
      %s26 = sphi 0, %s24
      %s27 = sphi 0, %s25
      %s28 = sphi 0, %s26
      %s46 = sphi 0, %s48
      %s49 = sphi 0, %s46
      %s50 = sphi 0, %s49
      %s66 = sphi 0, %s50
      %s70 = sphi 0, %s70
      %s72 = sphi 0, %s70
      %s73 = sphi 0, %s72
      %s87 = sphi 0, %s73
      %s91 = sphi 0, %s91
      %s93 = sphi 0, %s91
      %s94 = sphi 0, %s93
      %s108 = sphi 0, %s94
      %s112 = sphi 0, %s112
      %s114 = sphi 0, %s112
      %s115 = sphi 0, %s114
      %s129 = sphi 0, %s115
      %s133 = sphi 0, %s133
      %s135 = sphi 0, %s133
      %s136 = sphi 0, %s135
      %s150 = sphi 0, %s136
      %s154 = sphi 0, %s154
      %s156 = sphi 0, %s154
      %s157 = sphi 0, %s156
      %s171 = sphi 0, %s157
      %s175 = sphi 0, %s175
      %s177 = sphi 0, %s175
      %s178 = sphi 0, %s177
      %s192 = sphi 0, %s178
      %s200 = sphi 0, %s202
      %s203 = sphi 0, %s200
      %s204 = sphi 0, %s203
      %s220 = sphi 0, %s204
    $region4: #{tpu_custom_call.1} parent=1 // loop_header_branch
      %19 = sbr.rel (%p17) target = $region8
    $region5: #{tpu_custom_call.1} parent=1 // loop_body
      %s21 = ssub.s32 %s16, 1
      %s22 = ssub.s32 %s16, 2
      %s29 = sadd.s32 1, %s24
      %p30 = scmp.ge.s32.totalorder %s29, 4
      %s31 = scalar_select %p30, 0, %s29
      %s32 = sadd.s32 1, %s23
      %s33 = scalar_select %p30, %s32, %s23
      %p34 = scmp.ge.s32.totalorder %s33, 2
      %s35 = scalar_select %p34, 0, %s33
      %s36 = ssub.s32 1, %s23
      %s37 = smul.u32 %s36, %s24
      %s38 = smul.u32 %s23, 3
      %s39 = sadd.s32 %s37, %s38
      %s40 = ssub.s32 1, %s35
      %s41 = smul.u32 %s40, %s31
      %s42 = smul.u32 %s35, 3
      %s43 = sadd.s32 %s41, %s42
      %s44 = ssub.s32 %s39, %s43
      %p45 = scmp.eq.s32.totalorder %s44, 0
      %s47 = sadd.s32 %s46, 1
      %s48 = scalar_select %p45, %s46, %s47
      %p51 = pneg %p45
      %p52 = scmp.eq.s32.totalorder %s16, 7
      %p53 = por %p51, %p52
      %p54 = scmp.ne.s32.totalorder %s46, %s49
      %p55 = scmp.eq.s32.totalorder %s16, 0
      %p56 = por %p54, %p55
      %p57 = scmp.ne.s32.totalorder %s46, %s49
      %p58 = scmp.eq.s32.totalorder %s21, 7
      %p59 = por %p57, %p58
      %p60 = scmp.ne.s32.totalorder %s49, %s50
      %p61 = scmp.eq.s32.totalorder %s21, 0
      %p62 = por %p60, %p61
      %p63 = scmp.ne.s32.totalorder %s49, %s50
      %p64 = scmp.eq.s32.totalorder %s22, 7
      %p65 = por %p63, %p64
      %p67 = scmp.ne.s32.totalorder %s50, %s66
      %p68 = scmp.eq.s32.totalorder %s22, 0
      %p69 = por %p67, %p68
      %s71 = sadd.s32 %s70, 1
      %p74 = scmp.eq.s32.totalorder %s16, 7
      %p75 = scmp.ne.s32.totalorder %s70, %s72
      %p76 = scmp.eq.s32.totalorder %s16, 0
      %p77 = por %p75, %p76
      %p78 = scmp.ne.s32.totalorder %s70, %s72
      %p79 = scmp.eq.s32.totalorder %s21, 7
      %p80 = por %p78, %p79
      %p81 = scmp.ne.s32.totalorder %s72, %s73
      %p82 = scmp.eq.s32.totalorder %s21, 0
      %p83 = por %p81, %p82
      %p84 = scmp.ne.s32.totalorder %s72, %s73
      %p85 = scmp.eq.s32.totalorder %s22, 7
      %p86 = por %p84, %p85
      %p88 = scmp.ne.s32.totalorder %s73, %s87
      %p89 = scmp.eq.s32.totalorder %s22, 0
      %p90 = por %p88, %p89
      %s92 = sadd.s32 %s91, 1
      %p95 = scmp.eq.s32.totalorder %s16, 7
      %p96 = scmp.ne.s32.totalorder %s91, %s93
      %p97 = scmp.eq.s32.totalorder %s16, 0
      %p98 = por %p96, %p97
      %p99 = scmp.ne.s32.totalorder %s91, %s93
      %p100 = scmp.eq.s32.totalorder %s21, 7
      %p101 = por %p99, %p100
      %p102 = scmp.ne.s32.totalorder %s93, %s94
      %p103 = scmp.eq.s32.totalorder %s21, 0
      %p104 = por %p102, %p103
      %p105 = scmp.ne.s32.totalorder %s93, %s94
      %p106 = scmp.eq.s32.totalorder %s22, 7
      %p107 = por %p105, %p106
      %p109 = scmp.ne.s32.totalorder %s94, %s108
      %p110 = scmp.eq.s32.totalorder %s22, 0
      %p111 = por %p109, %p110
      %s113 = sadd.s32 %s112, 1
      %p116 = scmp.eq.s32.totalorder %s16, 7
      %p117 = scmp.ne.s32.totalorder %s112, %s114
      %p118 = scmp.eq.s32.totalorder %s16, 0
      %p119 = por %p117, %p118
      %p120 = scmp.ne.s32.totalorder %s112, %s114
      %p121 = scmp.eq.s32.totalorder %s21, 7
      %p122 = por %p120, %p121
      %p123 = scmp.ne.s32.totalorder %s114, %s115
      %p124 = scmp.eq.s32.totalorder %s21, 0
      %p125 = por %p123, %p124
      %p126 = scmp.ne.s32.totalorder %s114, %s115
      %p127 = scmp.eq.s32.totalorder %s22, 7
      %p128 = por %p126, %p127
      %p130 = scmp.ne.s32.totalorder %s115, %s129
      %p131 = scmp.eq.s32.totalorder %s22, 0
      %p132 = por %p130, %p131
      %s134 = sadd.s32 %s133, 1
      %p137 = scmp.eq.s32.totalorder %s16, 7
      %p138 = scmp.ne.s32.totalorder %s133, %s135
      %p139 = scmp.eq.s32.totalorder %s16, 0
      %p140 = por %p138, %p139
      %p141 = scmp.ne.s32.totalorder %s133, %s135
      %p142 = scmp.eq.s32.totalorder %s21, 7
      %p143 = por %p141, %p142
      %p144 = scmp.ne.s32.totalorder %s135, %s136
      %p145 = scmp.eq.s32.totalorder %s21, 0
      %p146 = por %p144, %p145
      %p147 = scmp.ne.s32.totalorder %s135, %s136
      %p148 = scmp.eq.s32.totalorder %s22, 7
      %p149 = por %p147, %p148
      %p151 = scmp.ne.s32.totalorder %s136, %s150
      %p152 = scmp.eq.s32.totalorder %s22, 0
      %p153 = por %p151, %p152
      %s155 = sadd.s32 %s154, 1
      %p158 = scmp.eq.s32.totalorder %s16, 7
      %p159 = scmp.ne.s32.totalorder %s154, %s156
      %p160 = scmp.eq.s32.totalorder %s16, 0
      %p161 = por %p159, %p160
      %p162 = scmp.ne.s32.totalorder %s154, %s156
      %p163 = scmp.eq.s32.totalorder %s21, 7
      %p164 = por %p162, %p163
      %p165 = scmp.ne.s32.totalorder %s156, %s157
      %p166 = scmp.eq.s32.totalorder %s21, 0
      %p167 = por %p165, %p166
      %p168 = scmp.ne.s32.totalorder %s156, %s157
      %p169 = scmp.eq.s32.totalorder %s22, 7
      %p170 = por %p168, %p169
      %p172 = scmp.ne.s32.totalorder %s157, %s171
      %p173 = scmp.eq.s32.totalorder %s22, 0
      %p174 = por %p172, %p173
      %s176 = sadd.s32 %s175, 1
      %p179 = scmp.eq.s32.totalorder %s16, 7
      %p180 = scmp.ne.s32.totalorder %s175, %s177
      %p181 = scmp.eq.s32.totalorder %s16, 0
      %p182 = por %p180, %p181
      %p183 = scmp.ne.s32.totalorder %s175, %s177
      %p184 = scmp.eq.s32.totalorder %s21, 7
      %p185 = por %p183, %p184
      %p186 = scmp.ne.s32.totalorder %s177, %s178
      %p187 = scmp.eq.s32.totalorder %s21, 0
      %p188 = por %p186, %p187
      %p189 = scmp.ne.s32.totalorder %s177, %s178
      %p190 = scmp.eq.s32.totalorder %s22, 7
      %p191 = por %p189, %p190
      %p193 = scmp.ne.s32.totalorder %s178, %s192
      %p194 = scmp.eq.s32.totalorder %s22, 0
      %p195 = por %p193, %p194
      %s196 = smul.u32 %s23, %s24
      %s197 = smul.u32 %s35, %s31
      %s198 = ssub.s32 %s196, %s197
      %p199 = scmp.eq.s32.totalorder %s198, 0
      %s201 = sadd.s32 %s200, 1
      %s202 = scalar_select %p199, %s200, %s201
      %p205 = pneg %p199
      %p206 = scmp.eq.s32.totalorder %s16, 7
      %p207 = por %p205, %p206
      %p208 = scmp.ne.s32.totalorder %s200, %s203
      %p209 = scmp.eq.s32.totalorder %s16, 0
      %p210 = por %p208, %p209
      %p211 = scmp.ne.s32.totalorder %s200, %s203
      %p212 = scmp.eq.s32.totalorder %s21, 7
      %p213 = por %p211, %p212
      %p214 = scmp.ne.s32.totalorder %s203, %s204
      %p215 = scmp.eq.s32.totalorder %s21, 0
      %p216 = por %p214, %p215
      %p217 = scmp.ne.s32.totalorder %s203, %s204
      %p218 = scmp.eq.s32.totalorder %s22, 7
      %p219 = por %p217, %p218
      %p221 = scmp.ne.s32.totalorder %s204, %s220
      %p222 = scmp.eq.s32.totalorder %s22, 0
      %p223 = por %p221, %p222
      %p224 = scmp.le.s32.totalorder 1, %s16
      %p225 = scmp.lt.s32.totalorder %s16, 9
      %p226 = pnand %p224, %p225
      %p227 = pneg %p226
      // Predicated region
      $region9: #{tpu_custom_call.1} parent=5 // pred_check
        _
      $region10: #{tpu_custom_call.1} parent=5 // pred_check_branch
        %229 = sbr.rel (%p226) target = $region12
      $region11: #{tpu_custom_call.1} parent=5 // pred_region
        %s230 = ssub.s32 %s16, 1
        // Predicated region
        $region13: #{tpu_custom_call.1} parent=11 // pred_check
          %p231 = pneg %p83
        $region14: #{tpu_custom_call.1} parent=11 // pred_check_branch
          %233 = sbr.rel (%p231) target = $region16
        $region15: #{tpu_custom_call.1} parent=11 // pred_region
          _
        $region16: #{tpu_custom_call.1} parent=11 // pred_fallthru
          _
        // Predicated region
        $region17: #{tpu_custom_call.1} parent=11 // pred_check
          %p234 = pneg %p104
        $region18: #{tpu_custom_call.1} parent=11 // pred_check_branch
          %236 = sbr.rel (%p234) target = $region20
        $region19: #{tpu_custom_call.1} parent=11 // pred_region
          _
        $region20: #{tpu_custom_call.1} parent=11 // pred_fallthru
          _
        // Predicated region
        $region21: #{tpu_custom_call.1} parent=11 // pred_check
          %p237 = pneg %p125
        $region22: #{tpu_custom_call.1} parent=11 // pred_check_branch
          %239 = sbr.rel (%p237) target = $region24
        $region23: #{tpu_custom_call.1} parent=11 // pred_region
          _
        $region24: #{tpu_custom_call.1} parent=11 // pred_fallthru
          _
        // Predicated region
        $region25: #{tpu_custom_call.1} parent=11 // pred_check
          %p240 = pneg %p146
        $region26: #{tpu_custom_call.1} parent=11 // pred_check_branch
          %242 = sbr.rel (%p240) target = $region28
        $region27: #{tpu_custom_call.1} parent=11 // pred_region
          _
        $region28: #{tpu_custom_call.1} parent=11 // pred_fallthru
          _
        // Predicated region
        $region29: #{tpu_custom_call.1} parent=11 // pred_check
          %p243 = pneg %p167
        $region30: #{tpu_custom_call.1} parent=11 // pred_check_branch
          %245 = sbr.rel (%p243) target = $region32
        $region31: #{tpu_custom_call.1} parent=11 // pred_region
          _
        $region32: #{tpu_custom_call.1} parent=11 // pred_fallthru
          _
        // Predicated region
        $region33: #{tpu_custom_call.1} parent=11 // pred_check
          %p246 = pneg %p188
        $region34: #{tpu_custom_call.1} parent=11 // pred_check_branch
          %248 = sbr.rel (%p246) target = $region36
        $region35: #{tpu_custom_call.1} parent=11 // pred_region
          _
        $region36: #{tpu_custom_call.1} parent=11 // pred_fallthru
          _
      $region12: #{tpu_custom_call.1} parent=5 // pred_fallthru
        _
      %p249 = scmp.lt.s32.totalorder %s16, 8
      // Predicated region
      $region37: #{tpu_custom_call.1} parent=5 // pred_check
        %p250 = pneg %p249
      $region38: #{tpu_custom_call.1} parent=5 // pred_check_branch
        %252 = sbr.rel (%p250) target = $region40
      $region39: #{tpu_custom_call.1} parent=5 // pred_region
        // Predicated region
        $region41: #{tpu_custom_call.1} parent=39 // pred_check
          %p253 = pneg %p56
        $region42: #{tpu_custom_call.1} parent=39 // pred_check_branch
          %255 = sbr.rel (%p253) target = $region44
        $region43: #{tpu_custom_call.1} parent=39 // pred_region
          %s256 = ssub.s32 1, %s23
          %s257 = smul.u32 %s256, %s24
          %s258 = smul.u32 %s23, 3
          %s259 = sadd.s32 %s257, %s258
          %s260 = smul.u32 4, %s259
          %s261 = ssub.s32 13, %s260
          %p262 = scmp.lt.s32.totalorder %s261, 4
          %s263 = scalar_select %p262, %s261, 4
          %s264 = smul.u32 64, %s263
          %s265 = smul.u32 %s264, 7
          %p266 = scmp.lt.s32.totalorder %s260, 12
          %s267 = scalar_select %p266, %s260, 12
          %s268 = smul.addr %s267, 7
          %s269 = smul.addr %s268, 4
          %s270 = scalar_lea.vmem %s0, %s269
          %s271 = ssub.s32 1, %s23
          %s272 = smul.u32 %s271, %s24
          %s273 = smul.u32 %s23, 3
          %s274 = sadd.s32 %s272, %s273
          %s275 = smul.u32 4, %s274
          %s276 = ssub.s32 13, %s275
          %p277 = scmp.lt.s32.totalorder %s276, 4
          %s278 = scalar_select %p277, %s276, 4
          %s279 = smul.u32 64, %s278
          %s280 = smul.u32 %s279, 7
        $region44: #{tpu_custom_call.1} parent=39 // pred_fallthru
          _
      $region40: #{tpu_custom_call.1} parent=5 // pred_fallthru
        _
      %p281 = scmp.le.s32.totalorder 1, %s16
      %p282 = scmp.lt.s32.totalorder %s16, 9
      %p283 = pnand %p281, %p282
      %p284 = pneg %p283
      // Predicated region
      $region45: #{tpu_custom_call.1} parent=5 // pred_check
        _
      $region46: #{tpu_custom_call.1} parent=5 // pred_check_branch
        %286 = sbr.rel (%p283) target = $region48
      $region47: #{tpu_custom_call.1} parent=5 // pred_region
        %s287 = ssub.s32 %s16, 1
        %s288 = ssub.s32 1, %s25
        %s289 = smul.u32 %s288, %s26
        %s290 = smul.u32 %s25, 3
        %s291 = sadd.s32 %s289, %s290
        %s292 = smul.u32 4, %s291
        %s293 = ssub.s32 13, %s292
        %p294 = scmp.lt.s32.totalorder %s293, 4
        %s295 = scalar_select %p294, %s293, 4
        %s296 = smul.u32 64, %s295
        %s297 = smul.u32 %s296, 7
        %p298 = scmp.lt.s32.totalorder %s292, 12
        %s299 = scalar_select %p298, %s292, 12
        %s300 = smul.addr %s299, 7
        %s301 = smul.addr %s300, 4
        %s302 = scalar_lea.vmem %s0, %s301
        %p303 = pneg %p62
        %p304 = pneg %p59
        %p305 = pneg %p83
        %p306 = pneg %p80
        %p307 = pneg %p104
        %p308 = pneg %p101
        %p309 = pneg %p125
        %p310 = pneg %p122
        %p311 = pneg %p146
        %p312 = pneg %p143
        %p313 = pneg %p167
        %p314 = pneg %p164
        %p315 = pneg %p188
        %p316 = pneg %p185
        %p317 = pneg %p216
        %p318 = pneg %p213
        %s319 = sand.u32 %s203, 1
        %s320 = scalar_lea.sflag [#allocation6], %s319
        %s321 = sand.u32 %s203, 1
        %s322 = smul.addr %s321, 16
        %s323 = scalar_lea.vmem [#allocation5], %s322
        %s324 = ssub.s32 1, %s25
        %s325 = smul.u32 %s324, %s26
        %s326 = smul.u32 %s25, 3
        %s327 = sadd.s32 %s325, %s326
        %s328 = smul.u32 4, %s327
        %s329 = ssub.s32 13, %s328
        %p330 = scmp.lt.s32.totalorder %s329, 4
        %s331 = scalar_select %p330, %s329, 4
        %s332 = smul.u32 64, %s331
        %s333 = smul.u32 %s332, 7
        %p334 = scmp.lt.s32.totalorder %s328, 12
        %s335 = scalar_select %p334, %s328, 12
        %s336 = smul.addr %s335, 7
        %s337 = smul.addr %s336, 4
        %s338 = scalar_lea.vmem %s0, %s337
        %s339 = ssub.s32 1, %s25
        %s340 = smul.u32 %s339, %s26
        %s341 = smul.u32 %s25, 3
        %s342 = sadd.s32 %s340, %s341
        %s343 = smul.u32 4, %s342
        %s344 = ssub.s32 13, %s343
        %p345 = scmp.lt.s32.totalorder %s344, 4
        %s346 = scalar_select %p345, %s344, 4
        %s347 = smul.u32 64, %s346
        %s348 = smul.u32 %s347, 7
        %s349 = smul.u32 %s25, %s26
        %s350 = smul.u32 4, %s349
        %s351 = ssub.s32 13, %s350
        %p352 = scmp.lt.s32.totalorder %s351, 4
        %s353 = scalar_select %p352, %s351, 4
        %s354 = smul.u32 64, %s353
        %s356 = smul.u32 %s26, 32
        %p357 = scmp.eq.s32.totalorder %s25, 0
        %p358 = scmp.eq.s32.totalorder %s26, 0
        %p359 = pnand %p357, %p358
        %p360 = pneg %p359
        // Predicated region
        $region49: #{tpu_custom_call.1} parent=47 // pred_check
          _
        $region50: #{tpu_custom_call.1} parent=47 // pred_check_branch
          %362 = sbr.rel (%p359) target = $region52
        $region51: #{tpu_custom_call.1} parent=47 // pred_region
          %vm363 = vcmask 253952
          %364 = vst.msk [vmem:[#allocation3] sm:$0x1] %vm363, 0.0
          %365 = vst.msk [vmem:[#allocation4] sm:$0x1] %vm363, 0.0
        $region52: #{tpu_custom_call.1} parent=47 // pred_fallthru
          _
        // Predicated region
        $region53: #{tpu_custom_call.1} parent=47 // pred_check
          %p366 = pneg %p357
        $region54: #{tpu_custom_call.1} parent=47 // pred_check_branch
          %368 = sbr.rel (%p366) target = $region56
        $region55: #{tpu_custom_call.1} parent=47 // pred_region
          %v369 = vld [vmem:[%s338] sm:$0xff]
          %v370 = vld [vmem:[%s338 + $0x8] sm:$0xff]
          %v371 = vld [vmem:[%s338 + $0x10] sm:$0xff]
          %v372 = vld [vmem:[%s338 + $0x18] sm:$0xf]
          %v373 = vld [vmem:[%s338 + $0x1c] sm:$0xff]
          %v374 = vld [vmem:[%s338 + $0x24] sm:$0xff]
          %v375 = vld [vmem:[%s338 + $0x2c] sm:$0xff]
          %v376 = vld [vmem:[%s338 + $0x34] sm:$0xf]
          %v377 = vld [vmem:[%s338 + $0x38] sm:$0xff]
          %v378 = vld [vmem:[%s338 + $0x40] sm:$0xff]
          %v379 = vld [vmem:[%s338 + $0x48] sm:$0xff]
          %v380 = vld [vmem:[%s338 + $0x50] sm:$0xf]
          %v381 = vld [vmem:[%s338 + $0x54] sm:$0xff]
          %v382 = vld [vmem:[%s338 + $0x5c] sm:$0xff]
          %v383 = vld [vmem:[%s338 + $0x64] sm:$0xff]
          %v384 = vld [vmem:[%s338 + $0x6c] sm:$0xf]
          %v385 = vld [vmem:[%s1] sm:$0xf]
          %v386 = vld [vmem:[%s1 + $0x4] sm:$0xf]
          %v387 = vld [vmem:[%s1 + $0x8] sm:$0xf]
          %v388 = vld [vmem:[%s1 + $0xc] sm:$0xf]
          %v389 = vld [vmem:[%s1 + $0x10] sm:$0xf]
          %v390 = vld [vmem:[%s1 + $0x14] sm:$0xf]
          %v391 = vld [vmem:[%s1 + $0x18] sm:$0xf]
          %v392 = vld [vmem:[%s1 + $0x1c] sm:$0xf]
          %v393 = vld [vmem:[%s1 + $0x20] sm:$0xf]
          %v394 = vld [vmem:[%s1 + $0x24] sm:$0xf]
          %v395 = vld [vmem:[%s1 + $0x28] sm:$0xf]
          %v396 = vld [vmem:[%s1 + $0x2c] sm:$0xf]
          %v397 = vld [vmem:[%s1 + $0x30] sm:$0xf]
          %v398 = vld [vmem:[%s1 + $0x34] sm:$0xf]
          %v399 = vld [vmem:[%s1 + $0x38] sm:$0xf]
          %v400 = vld [vmem:[%s1 + $0x3c] sm:$0xf]
          %v401 = vld [vmem:[%s1 + $0x40] sm:$0xf]
          %v402 = vld [vmem:[%s1 + $0x44] sm:$0xf]
          %v403 = vld [vmem:[%s1 + $0x48] sm:$0xf]
          %v404 = vld [vmem:[%s1 + $0x4c] sm:$0xf]
          %v405 = vld [vmem:[%s1 + $0x50] sm:$0xf]
          %v406 = vld [vmem:[%s1 + $0x54] sm:$0xf]
          %v407 = vld [vmem:[%s1 + $0x58] sm:$0xf]
          %v408 = vld [vmem:[%s1 + $0x5c] sm:$0xf]
          %v409 = vld [vmem:[%s1 + $0x60] sm:$0xf]
          %v410 = vld [vmem:[%s1 + $0x64] sm:$0xf]
          %v411 = vld [vmem:[%s1 + $0x68] sm:$0xf]
          %v412 = vld [vmem:[%s1 + $0x6c] sm:$0xf]
          %v413 = vld [vmem:[%s1 + $0x70] sm:$0xf]
          %v414 = vld [vmem:[%s1 + $0x74] sm:$0xf]
          %v415 = vld [vmem:[%s1 + $0x78] sm:$0xf]
          %v416 = vld [vmem:[%s1 + $0x7c] sm:$0xf]
          %v417 = vld [vmem:[%s1 + $0x80] sm:$0xf]
          %v418 = vld [vmem:[%s1 + $0x84] sm:$0xf]
          %v419 = vld [vmem:[%s1 + $0x88] sm:$0xf]
          %v420 = vld [vmem:[%s1 + $0x8c] sm:$0xf]
          %v421 = vld [vmem:[%s1 + $0x90] sm:$0xf]
          %v422 = vld [vmem:[%s1 + $0x94] sm:$0xf]
          %v423 = vld [vmem:[%s1 + $0x98] sm:$0xf]
          %v424 = vld [vmem:[%s1 + $0x9c] sm:$0xf]
          %v425 = vld [vmem:[%s1 + $0xa0] sm:$0xf]
          %v426 = vld [vmem:[%s1 + $0xa4] sm:$0xf]
          %v427 = vld [vmem:[%s1 + $0xa8] sm:$0xf]
          %v428 = vld [vmem:[%s1 + $0xac] sm:$0xf]
          %v429 = vld [vmem:[%s1 + $0xb0] sm:$0xf]
          %v430 = vld [vmem:[%s1 + $0xb4] sm:$0xf]
          %v431 = vld [vmem:[%s1 + $0xb8] sm:$0xf]
          %v432 = vld [vmem:[%s1 + $0xbc] sm:$0xf]
          %v433 = vld [vmem:[%s1 + $0xc0] sm:$0xf]
          %v434 = vld [vmem:[%s1 + $0xc4] sm:$0xf]
          %v435 = vld [vmem:[%s1 + $0xc8] sm:$0xf]
          %v436 = vld [vmem:[%s1 + $0xcc] sm:$0xf]
          %v437 = vld [vmem:[%s1 + $0xd0] sm:$0xf]
          %v438 = vld [vmem:[%s1 + $0xd4] sm:$0xf]
          %v439 = vld [vmem:[%s1 + $0xd8] sm:$0xf]
          %v440 = vld [vmem:[%s1 + $0xdc] sm:$0xf]
          %v441 = vld [vmem:[%s1 + $0xe0] sm:$0xf]
          %v442 = vld [vmem:[%s1 + $0xe4] sm:$0xf]
          %v443 = vld [vmem:[%s1 + $0xe8] sm:$0xf]
          %v444 = vld [vmem:[%s1 + $0xec] sm:$0xf]
          %v445 = vld [vmem:[%s1 + $0xf0] sm:$0xf]
          %v446 = vld [vmem:[%s1 + $0xf4] sm:$0xf]
          %v447 = vld [vmem:[%s1 + $0xf8] sm:$0xf]
          %v448 = vld [vmem:[%s1 + $0xfc] sm:$0xf]
          %v449 = vld [vmem:[%s1 + $0x100] sm:$0xf]
          %v450 = vld [vmem:[%s1 + $0x104] sm:$0xf]
          %v451 = vld [vmem:[%s1 + $0x108] sm:$0xf]
          %v452 = vld [vmem:[%s1 + $0x10c] sm:$0xf]
          %v453 = vld [vmem:[%s1 + $0x110] sm:$0xf]
          %v454 = vld [vmem:[%s1 + $0x114] sm:$0xf]
          %v455 = vld [vmem:[%s1 + $0x118] sm:$0xf]
          %v456 = vld [vmem:[%s1 + $0x11c] sm:$0xf]
          %v457 = vld [vmem:[%s1 + $0x120] sm:$0xf]
          %v458 = vld [vmem:[%s1 + $0x124] sm:$0xf]
          %v459 = vld [vmem:[%s1 + $0x128] sm:$0xf]
          %v460 = vld [vmem:[%s1 + $0x12c] sm:$0xf]
          %v461 = vld [vmem:[%s1 + $0x130] sm:$0xf]
          %v462 = vld [vmem:[%s1 + $0x134] sm:$0xf]
          %v463 = vld [vmem:[%s1 + $0x138] sm:$0xf]
          %v464 = vld [vmem:[%s1 + $0x13c] sm:$0xf]
          %v465 = vld [vmem:[%s1 + $0x140] sm:$0xf]
          %v466 = vld [vmem:[%s1 + $0x144] sm:$0xf]
          %v467 = vld [vmem:[%s1 + $0x148] sm:$0xf]
          %v468 = vld [vmem:[%s1 + $0x14c] sm:$0xf]
          %v469 = vld [vmem:[%s1 + $0x150] sm:$0xf]
          %v470 = vld [vmem:[%s1 + $0x154] sm:$0xf]
          %v471 = vld [vmem:[%s1 + $0x158] sm:$0xf]
          %v472 = vld [vmem:[%s1 + $0x15c] sm:$0xf]
          %v473 = vld [vmem:[%s1 + $0x160] sm:$0xf]
          %v474 = vld [vmem:[%s1 + $0x164] sm:$0xf]
          %v475 = vld [vmem:[%s1 + $0x168] sm:$0xf]
          %v476 = vld [vmem:[%s1 + $0x16c] sm:$0xf]
          %v477 = vld [vmem:[%s1 + $0x170] sm:$0xf]
          %v478 = vld [vmem:[%s1 + $0x174] sm:$0xf]
          %v479 = vld [vmem:[%s1 + $0x178] sm:$0xf]
          %v480 = vld [vmem:[%s1 + $0x17c] sm:$0xf]
          %v481 = vld [vmem:[%s1 + $0x180] sm:$0xf]
          %v482 = vld [vmem:[%s1 + $0x184] sm:$0xf]
          %v483 = vld [vmem:[%s2] sm:$0x1]
          %v485 = vlaneseq
          %v486 = vshrl.u32 %v485, 7
          %v487 = vsub.s32 0, %v486
          %v488 = vrot.slane %v483, %v487
          %v506 = vunpack.c.l.b16 %v369
          %v507 = vunpack.c.h.b16 %v369
          %v508 = vunpack.c.l.b16 %v370
          %v509 = vunpack.c.h.b16 %v370
          %v510 = vunpack.c.l.b16 %v371
          %v511 = vunpack.c.h.b16 %v371
          %v512 = vunpack.c.l.b16 %v372
          %v513 = vunpack.c.l.b16 %v373
          %v514 = vunpack.c.h.b16 %v373
          %v515 = vunpack.c.l.b16 %v374
          %v516 = vunpack.c.h.b16 %v374
          %v517 = vunpack.c.l.b16 %v375
          %v518 = vunpack.c.h.b16 %v375
          %v519 = vunpack.c.l.b16 %v376
          %v520 = vunpack.c.l.b16 %v377
          %v521 = vunpack.c.h.b16 %v377
          %v522 = vunpack.c.l.b16 %v378
          %v523 = vunpack.c.h.b16 %v378
          %v524 = vunpack.c.l.b16 %v379
          %v525 = vunpack.c.h.b16 %v379
          %v526 = vunpack.c.l.b16 %v380
          %v527 = vunpack.c.l.b16 %v381
          %v528 = vunpack.c.h.b16 %v381
          %v529 = vunpack.c.l.b16 %v382
          %v530 = vunpack.c.h.b16 %v382
          %v531 = vunpack.c.l.b16 %v383
          %v532 = vunpack.c.h.b16 %v383
          %v533 = vunpack.c.l.b16 %v384
          %v534 = vpack.c.b16 %v513, %v506
          %v535 = vpack.c.b16 %v514, %v507
          %v536 = vpack.c.b16 %v515, %v508
          %v537 = vpack.c.b16 %v516, %v509
          %v538 = vpack.c.b16 %v517, %v510
          %v539 = vpack.c.b16 %v518, %v511
          %v540 = vpack.c.b16 %v519, %v512
          %v541 = vpack.c.b16 %v527, %v520
          %v542 = vpack.c.b16 %v528, %v521
          %v543 = vpack.c.b16 %v529, %v522
          %v544 = vpack.c.b16 %v530, %v523
          %v545 = vpack.c.b16 %v531, %v524
          %v546 = vpack.c.b16 %v532, %v525
          %v547 = vpack.c.b16 %v533, %v526
          %v658 = vunpack.c.l.b16 %v385
          %v659 = vunpack.c.l.b16 %v386
          %v660 = vunpack.c.l.b16 %v387
          %v661 = vunpack.c.l.b16 %v388
          %v662 = vunpack.c.l.b16 %v389
          %v663 = vunpack.c.l.b16 %v390
          %v664 = vunpack.c.l.b16 %v391
          %v665 = vunpack.c.l.b16 %v392
          %v666 = vunpack.c.l.b16 %v393
          %v667 = vunpack.c.l.b16 %v394
          %v668 = vunpack.c.l.b16 %v395
          %v669 = vunpack.c.l.b16 %v396
          %v670 = vunpack.c.l.b16 %v397
          %v671 = vunpack.c.l.b16 %v398
          %v672 = vunpack.c.l.b16 %v399
          %v673 = vunpack.c.l.b16 %v400
          %v674 = vunpack.c.l.b16 %v401
          %v675 = vunpack.c.l.b16 %v402
          %v676 = vunpack.c.l.b16 %v403
          %v677 = vunpack.c.l.b16 %v404
          %v678 = vunpack.c.l.b16 %v405
          %v679 = vunpack.c.l.b16 %v406
          %v680 = vunpack.c.l.b16 %v407
          %v681 = vunpack.c.l.b16 %v408
          %v682 = vunpack.c.l.b16 %v409
          %v683 = vunpack.c.l.b16 %v410
          %v684 = vunpack.c.l.b16 %v411
          %v685 = vunpack.c.l.b16 %v412
          %v686 = vunpack.c.l.b16 %v413
          %v687 = vunpack.c.l.b16 %v414
          %v688 = vunpack.c.l.b16 %v415
          %v689 = vunpack.c.l.b16 %v416
          %v690 = vunpack.c.l.b16 %v417
          %v691 = vunpack.c.l.b16 %v418
          %v692 = vunpack.c.l.b16 %v419
          %v693 = vunpack.c.l.b16 %v420
          %v694 = vunpack.c.l.b16 %v421
          %v695 = vunpack.c.l.b16 %v422
          %v696 = vunpack.c.l.b16 %v423
          %v697 = vunpack.c.l.b16 %v424
          %v698 = vunpack.c.l.b16 %v425
          %v699 = vunpack.c.l.b16 %v426
          %v700 = vunpack.c.l.b16 %v427
          %v701 = vunpack.c.l.b16 %v428
          %v702 = vunpack.c.l.b16 %v429
          %v703 = vunpack.c.l.b16 %v430
          %v704 = vunpack.c.l.b16 %v431
          %v705 = vunpack.c.l.b16 %v432
          %v706 = vunpack.c.l.b16 %v433
          %v707 = vunpack.c.l.b16 %v434
          %v708 = vunpack.c.l.b16 %v435
          %v709 = vunpack.c.l.b16 %v436
          %v710 = vunpack.c.l.b16 %v437
          %v711 = vunpack.c.l.b16 %v438
          %v712 = vunpack.c.l.b16 %v439
          %v713 = vunpack.c.l.b16 %v440
          %v714 = vunpack.c.l.b16 %v441
          %v715 = vunpack.c.l.b16 %v442
          %v716 = vunpack.c.l.b16 %v443
          %v717 = vunpack.c.l.b16 %v444
          %v718 = vunpack.c.l.b16 %v445
          %v719 = vunpack.c.l.b16 %v446
          %v720 = vunpack.c.l.b16 %v447
          %v721 = vunpack.c.l.b16 %v448
          %v722 = vunpack.c.l.b16 %v449
          %v723 = vunpack.c.l.b16 %v450
          %v724 = vunpack.c.l.b16 %v451
          %v725 = vunpack.c.l.b16 %v452
          %v726 = vunpack.c.l.b16 %v453
          %v727 = vunpack.c.l.b16 %v454
          %v728 = vunpack.c.l.b16 %v455
          %v729 = vunpack.c.l.b16 %v456
          %v730 = vunpack.c.l.b16 %v457
          %v731 = vunpack.c.l.b16 %v458
          %v732 = vunpack.c.l.b16 %v459
          %v733 = vunpack.c.l.b16 %v460
          %v734 = vunpack.c.l.b16 %v461
          %v735 = vunpack.c.l.b16 %v462
          %v736 = vunpack.c.l.b16 %v463
          %v737 = vunpack.c.l.b16 %v464
          %v738 = vunpack.c.l.b16 %v465
          %v739 = vunpack.c.l.b16 %v466
          %v740 = vunpack.c.l.b16 %v467
          %v741 = vunpack.c.l.b16 %v468
          %v742 = vunpack.c.l.b16 %v469
          %v743 = vunpack.c.l.b16 %v470
          %v744 = vunpack.c.l.b16 %v471
          %v745 = vunpack.c.l.b16 %v472
          %v746 = vunpack.c.l.b16 %v473
          %v747 = vunpack.c.l.b16 %v474
          %v748 = vunpack.c.l.b16 %v475
          %v749 = vunpack.c.l.b16 %v476
          %v750 = vunpack.c.l.b16 %v477
          %v751 = vunpack.c.l.b16 %v478
          %v752 = vunpack.c.l.b16 %v479
          %v753 = vunpack.c.l.b16 %v480
          %v754 = vunpack.c.l.b16 %v481
          %v755 = vunpack.c.l.b16 %v482
          %v756 = vpack.c.b16 %v659, %v658
          %v757 = vpack.c.b16 %v661, %v660
          %v758 = vpack.c.b16 %v663, %v662
          %v759 = vpack.c.b16 %v665, %v664
          %v760 = vpack.c.b16 %v667, %v666
          %v761 = vpack.c.b16 %v669, %v668
          %v762 = vpack.c.b16 %v671, %v670
          %v763 = vpack.c.b16 %v673, %v672
          %v764 = vpack.c.b16 %v675, %v674
          %v765 = vpack.c.b16 %v677, %v676
          %v766 = vpack.c.b16 %v679, %v678
          %v767 = vpack.c.b16 %v681, %v680
          %v768 = vpack.c.b16 %v683, %v682
          %v769 = vpack.c.b16 %v685, %v684
          %v770 = vpack.c.b16 %v687, %v686
          %v771 = vpack.c.b16 %v689, %v688
          %v772 = vpack.c.b16 %v691, %v690
          %v773 = vpack.c.b16 %v693, %v692
          %v774 = vpack.c.b16 %v695, %v694
          %v775 = vpack.c.b16 %v697, %v696
          %v776 = vpack.c.b16 %v699, %v698
          %v777 = vpack.c.b16 %v701, %v700
          %v778 = vpack.c.b16 %v703, %v702
          %v779 = vpack.c.b16 %v705, %v704
          %v780 = vpack.c.b16 %v707, %v706
          %v781 = vpack.c.b16 %v709, %v708
          %v782 = vpack.c.b16 %v711, %v710
          %v783 = vpack.c.b16 %v713, %v712
          %v784 = vpack.c.b16 %v715, %v714
          %v785 = vpack.c.b16 %v717, %v716
          %v786 = vpack.c.b16 %v719, %v718
          %v787 = vpack.c.b16 %v721, %v720
          %v788 = vpack.c.b16 %v723, %v722
          %v789 = vpack.c.b16 %v725, %v724
          %v790 = vpack.c.b16 %v727, %v726
          %v791 = vpack.c.b16 %v729, %v728
          %v792 = vpack.c.b16 %v731, %v730
          %v793 = vpack.c.b16 %v733, %v732
          %v794 = vpack.c.b16 %v735, %v734
          %v795 = vpack.c.b16 %v737, %v736
          %v796 = vpack.c.b16 %v739, %v738
          %v797 = vpack.c.b16 %v741, %v740
          %v798 = vpack.c.b16 %v743, %v742
          %v799 = vpack.c.b16 %v745, %v744
          %v800 = vpack.c.b16 %v747, %v746
          %v801 = vpack.c.b16 %v749, %v748
          %v802 = vpack.c.b16 %v751, %v750
          %v803 = vpack.c.b16 %v753, %v752
          %v804 = vpack.c.b16 %v755, %v754
          %vm854 = vcmask 130048
          %v856 = vsel %vm854, %v540, 0
          %v859 = vsel %vm854, %v547, 0
          %861 = vmatprep.subr.bf16.mxu0 0
          %862 = vmatpush1.bf16.msra.mxu0 %v756
          %863 = vmatprep.subr.bf16.mxu0 0
          %864 = vmatpush1.bf16.msra.mxu0 %v757
          %865 = vmatprep.subr.bf16.mxu0 0
          %866 = vmatpush1.bf16.msra.mxu0 %v758
          %867 = vmatprep.subr.bf16.mxu0 0
          %868 = vmatpush1.bf16.msra.mxu0 %v759
          %869 = vmatprep.subr.bf16.mxu0 0
          %870 = vmatpush1.bf16.msra.mxu0 %v760
          %871 = vmatprep.subr.bf16.mxu0 0
          %872 = vmatpush1.bf16.msra.mxu0 %v761
          %873 = vmatprep.subr.bf16.mxu0 0
          %874 = vmatpush1.bf16.msra.mxu0 %v762
          %875 = vmatprep.subr.bf16.mxu0 0
          %876 = vmatpush1.bf16.msra.mxu0 %v763
          %877 = vmatprep.subr.bf16.mxu0 0
          %878 = vmatpush1.bf16.msra.mxu0 %v764
          %879 = vmatprep.subr.bf16.mxu0 0
          %880 = vmatpush1.bf16.msra.mxu0 %v765
          %881 = vmatprep.subr.bf16.mxu0 0
          %882 = vmatpush1.bf16.msra.mxu0 %v766
          %883 = vmatprep.subr.bf16.mxu0 0
          %884 = vmatpush1.bf16.msra.mxu0 %v767
          %885 = vmatprep.subr.bf16.mxu0 0
          %886 = vmatpush1.bf16.msra.mxu0 %v768
          %887 = vmatprep.subr.bf16.mxu0 0
          %888 = vmatpush1.bf16.msra.mxu0 %v769
          %889 = vmatprep.subr.bf16.mxu0 0
          %890 = vmatpush1.bf16.msra.mxu0 %v770
          %891 = vmatprep.subr.bf16.mxu0 0
          %892 = vmatpush1.bf16.msra.mxu0 %v771
          %893 = vmatprep.mubr.bf16.mxu0 %v535
          %894 = vmatmul.mubr.bf16.gmra.mrb[0].mxu0 %v534
          %v895 = vpop.f32.mrb[0].mxu0
          %v896 = vadd.f32 %v488, %v895
          %v897 = vpop.f32.mrb[0].mxu0
          %v898 = vpop.f32.mrb[0].mxu0
          %v899 = vadd.f32 %v488, %v898
          %v900 = vpop.f32.mrb[0].mxu0
          %901 = vmatprep.mubr.bf16.mxu0 %v542
          %902 = vmatmul.mubr.bf16.gmra.mrb[0].mxu0 %v541
          %v903 = vpop.f32.mrb[0].mxu0
          %v904 = vadd.f32 %v488, %v903
          %v905 = vpop.f32.mrb[0].mxu0
          %v906 = vpop.f32.mrb[0].mxu0
          %v907 = vadd.f32 %v488, %v906
          %v908 = vpop.f32.mrb[0].mxu0
          %909 = vdwg.mxu0
          %910 = vmatprep.subr.bf16.mxu0 0
          %911 = vmatpush1.bf16.msra.mxu0 %v772
          %912 = vmatprep.subr.bf16.mxu0 0
          %913 = vmatpush1.bf16.msra.mxu0 %v773
          %914 = vmatprep.subr.bf16.mxu0 0
          %915 = vmatpush1.bf16.msra.mxu0 %v774
          %916 = vmatprep.subr.bf16.mxu0 0
          %917 = vmatpush1.bf16.msra.mxu0 %v775
          %918 = vmatprep.subr.bf16.mxu0 0
          %919 = vmatpush1.bf16.msra.mxu0 %v776
          %920 = vmatprep.subr.bf16.mxu0 0
          %921 = vmatpush1.bf16.msra.mxu0 %v777
          %922 = vmatprep.subr.bf16.mxu0 0
          %923 = vmatpush1.bf16.msra.mxu0 %v778
          %924 = vmatprep.subr.bf16.mxu0 0
          %925 = vmatpush1.bf16.msra.mxu0 %v779
          %926 = vmatprep.subr.bf16.mxu0 0
          %927 = vmatpush1.bf16.msra.mxu0 %v780
          %928 = vmatprep.subr.bf16.mxu0 0
          %929 = vmatpush1.bf16.msra.mxu0 %v781
          %930 = vmatprep.subr.bf16.mxu0 0
          %931 = vmatpush1.bf16.msra.mxu0 %v782
          %932 = vmatprep.subr.bf16.mxu0 0
          %933 = vmatpush1.bf16.msra.mxu0 %v783
          %934 = vmatprep.subr.bf16.mxu0 0
          %935 = vmatpush1.bf16.msra.mxu0 %v784
          %936 = vmatprep.subr.bf16.mxu0 0
          %937 = vmatpush1.bf16.msra.mxu0 %v785
          %938 = vmatprep.subr.bf16.mxu0 0
          %939 = vmatpush1.bf16.msra.mxu0 %v786
          %940 = vmatprep.subr.bf16.mxu0 0
          %941 = vmatpush1.bf16.msra.mxu0 %v787
          %942 = vmatprep.mubr.bf16.mxu0 %v537
          %943 = vmatmul.mubr.bf16.gmra.mrb[0].mxu0 %v536
          %v944 = vpop.f32.mrb[0].mxu0
          %v945 = vadd.f32 %v896, %v944
          %v946 = vpop.f32.mrb[0].mxu0
          %v947 = vpop.f32.mrb[0].mxu0
          %v948 = vadd.f32 %v899, %v947
          %v949 = vpop.f32.mrb[0].mxu0
          %950 = vmatprep.mubr.bf16.mxu0 %v544
          %951 = vmatmul.mubr.bf16.gmra.mrb[0].mxu0 %v543
          %v952 = vpop.f32.mrb[0].mxu0
          %v953 = vadd.f32 %v904, %v952
          %v954 = vpop.f32.mrb[0].mxu0
          %v955 = vpop.f32.mrb[0].mxu0
          %v956 = vadd.f32 %v907, %v955
          %v957 = vpop.f32.mrb[0].mxu0
          %958 = vdwg.mxu0
          %959 = vmatprep.subr.bf16.mxu0 0
          %960 = vmatpush1.bf16.msra.mxu0 %v788
          %961 = vmatprep.subr.bf16.mxu0 0
          %962 = vmatpush1.bf16.msra.mxu0 %v789
          %963 = vmatprep.subr.bf16.mxu0 0
          %964 = vmatpush1.bf16.msra.mxu0 %v790
          %965 = vmatprep.subr.bf16.mxu0 0
          %966 = vmatpush1.bf16.msra.mxu0 %v791
          %967 = vmatprep.subr.bf16.mxu0 0
          %968 = vmatpush1.bf16.msra.mxu0 %v792
          %969 = vmatprep.subr.bf16.mxu0 0
          %970 = vmatpush1.bf16.msra.mxu0 %v793
          %971 = vmatprep.subr.bf16.mxu0 0
          %972 = vmatpush1.bf16.msra.mxu0 %v794
          %973 = vmatprep.subr.bf16.mxu0 0
          %974 = vmatpush1.bf16.msra.mxu0 %v795
          %975 = vmatprep.subr.bf16.mxu0 0
          %976 = vmatpush1.bf16.msra.mxu0 %v796
          %977 = vmatprep.subr.bf16.mxu0 0
          %978 = vmatpush1.bf16.msra.mxu0 %v797
          %979 = vmatprep.subr.bf16.mxu0 0
          %980 = vmatpush1.bf16.msra.mxu0 %v798
          %981 = vmatprep.subr.bf16.mxu0 0
          %982 = vmatpush1.bf16.msra.mxu0 %v799
          %983 = vmatprep.subr.bf16.mxu0 0
          %984 = vmatpush1.bf16.msra.mxu0 %v800
          %985 = vmatprep.subr.bf16.mxu0 0
          %986 = vmatpush1.bf16.msra.mxu0 %v801
          %987 = vmatprep.subr.bf16.mxu0 0
          %988 = vmatpush1.bf16.msra.mxu0 %v802
          %989 = vmatprep.subr.bf16.mxu0 0
          %990 = vmatpush1.bf16.msra.mxu0 %v803
          %991 = vmatprep.mubr.bf16.mxu0 %v539
          %992 = vmatmul.mubr.bf16.gmra.mrb[0].mxu0 %v538
          %v993 = vpop.f32.mrb[0].mxu0
          %v994 = vadd.f32 %v945, %v993
          %v995 = vpop.f32.mrb[0].mxu0
          %v996 = vpop.f32.mrb[0].mxu0
          %v997 = vadd.f32 %v948, %v996
          %v998 = vpop.f32.mrb[0].mxu0
          %999 = vmatprep.mubr.bf16.mxu0 %v546
          %1000 = vmatmul.mubr.bf16.gmra.mrb[0].mxu0 %v545
          %v1001 = vpop.f32.mrb[0].mxu0
          %v1002 = vadd.f32 %v953, %v1001
          %v1003 = vpop.f32.mrb[0].mxu0
          %v1004 = vpop.f32.mrb[0].mxu0
          %v1005 = vadd.f32 %v956, %v1004
          %v1006 = vpop.f32.mrb[0].mxu0
          %1007 = vdwg.mxu0
          %1008 = vmatprep.subr.bf16.mxu0 0
          %1009 = vmatpush1.bf16.msra.mxu0 %v804
          %1010 = vmatprep.subr.bf16.mxu0 0
          %1011 = vmatpush1.bf16.msra.mxu0 0
          %1012 = vmatprep.subr.bf16.mxu0 0
          %1013 = vmatpush1.bf16.msra.mxu0 0
          %1014 = vmatprep.subr.bf16.mxu0 0
          %1015 = vmatpush1.bf16.msra.mxu0 0
          %1016 = vmatprep.subr.bf16.mxu0 0
          %1017 = vmatpush1.bf16.msra.mxu0 0
          %1018 = vmatprep.subr.bf16.mxu0 0
          %1019 = vmatpush1.bf16.msra.mxu0 0
          %1020 = vmatprep.subr.bf16.mxu0 0
          %1021 = vmatpush1.bf16.msra.mxu0 0
          %1022 = vmatprep.subr.bf16.mxu0 0
          %1023 = vmatpush1.bf16.msra.mxu0 0
          %1024 = vmatprep.subr.bf16.mxu0 0
          %1025 = vmatpush1.bf16.msra.mxu0 0
          %1026 = vmatprep.subr.bf16.mxu0 0
          %1027 = vmatpush1.bf16.msra.mxu0 0
          %1028 = vmatprep.subr.bf16.mxu0 0
          %1029 = vmatpush1.bf16.msra.mxu0 0
          %1030 = vmatprep.subr.bf16.mxu0 0
          %1031 = vmatpush1.bf16.msra.mxu0 0
          %1032 = vmatprep.subr.bf16.mxu0 0
          %1033 = vmatpush1.bf16.msra.mxu0 0
          %1034 = vmatprep.subr.bf16.mxu0 0
          %1035 = vmatpush1.bf16.msra.mxu0 0
          %1036 = vmatprep.subr.bf16.mxu0 0
          %1037 = vmatpush1.bf16.msra.mxu0 0
          %1038 = vmatprep.subr.bf16.mxu0 0
          %1039 = vmatpush1.bf16.msra.mxu0 0
          %1040 = vmatprep.mubr.bf16.mxu0 0
          %1041 = vmatmul.mubr.bf16.gmra.mrb[0].mxu0 %v856
          %v1042 = vpop.f32.mrb[0].mxu0
          %v1043 = vadd.f32 %v994, %v1042
          %v1044 = vpop.f32.mrb[0].mxu0
          %v1045 = vpop.f32.mrb[0].mxu0
          %v1046 = vadd.f32 %v997, %v1045
          %v1047 = vpop.f32.mrb[0].mxu0
          %1048 = vmatprep.mubr.bf16.mxu0 0
          %1049 = vmatmul.mubr.bf16.gmra.mrb[0].mxu0 %v859
          %v1050 = vpop.f32.mrb[0].mxu0
          %v1051 = vadd.f32 %v1002, %v1050
          %v1052 = vpop.f32.mrb[0].mxu0
          %v1053 = vpop.f32.mrb[0].mxu0
          %v1054 = vadd.f32 %v1005, %v1053
          %v1055 = vpop.f32.mrb[0].mxu0
          %1056 = vdwg.mxu0
          %v1057 = vmax.f32 %v1043, 0.0
          %v1058 = vmax.f32 %v1046, 0.0
          %v1059 = vmax.f32 %v1051, 0.0
          %v1060 = vmax.f32 %v1054, 0.0
          %v1061 = vlaneseq
          %v1062 = vshrl.u32 %v1061, 7
          %v1063 = vadd.s32 %v1062, 8
          %v1064 = vadd.s32 %v1062, 16
          %v1065 = vadd.s32 %v1062, 24
          %v1066 = vstv %s356
          %v1067 = vadd.s32 %v1066, %v1062
          %v1068 = vadd.s32 %v1066, %v1063
          %v1069 = vadd.s32 %v1066, %v1064
          %v1070 = vadd.s32 %v1066, %v1065
          %vm1071 = vcmp.lt.s32.totalorder %v1067, 100
          %vm1072 = vcmp.lt.s32.totalorder %v1068, 100
          %vm1073 = vcmp.lt.s32.totalorder %v1069, 100
          %vm1074 = vcmp.lt.s32.totalorder %v1070, 100
          %v1075 = vsel %vm1071, %v1057, 0.0
          %v1076 = vsel %vm1072, %v1058, 0.0
          %v1077 = vsel %vm1073, %v1059, 0.0
          %v1078 = vsel %vm1074, %v1060, 0.0
          %v1079 = vld [vmem:[#allocation3] sm:$0x1]
          %vm1080 = vcmask 261120
          %v1081 = vsel %vm1080, %v1075, 0.0
          %v1082 = vsel %vm1080, %v1076, 0.0
          %v1083 = vadd.f32 %v1081, %v1082
          %v1084 = vsel %vm1080, %v1077, 0.0
          %v1085 = vadd.f32 %v1083, %v1084
          %v1086 = vsel %vm1080, %v1078, 0.0
          %v1087 = vadd.f32 %v1085, %v1086
          %v1088 = vrot.slane %v1087, 4
          %v1089 = vadd.f32 %v1087, %v1088
          %v1090 = vrot.slane %v1089, 2
          %v1091 = vadd.f32 %v1089, %v1090
          %v1092 = vrot.slane %v1091, 1
          %v1093 = vadd.f32 %v1091, %v1092
          %v1094 = vadd.f32 %v1079, %v1093
          %vm1095 = vcmask 253952
          %1096 = vst.msk [vmem:[#allocation3] sm:$0x1] %vm1095, %v1094
          %v1097 = vld [vmem:[#allocation4] sm:$0x1]
          %v1098 = vmul.f32 %v1075, %v1075
          %v1099 = vmul.f32 %v1076, %v1076
          %v1100 = vmul.f32 %v1077, %v1077
          %v1101 = vmul.f32 %v1078, %v1078
          %v1102 = vsel %vm1080, %v1098, 0.0
          %v1103 = vsel %vm1080, %v1099, 0.0
          %v1104 = vadd.f32 %v1102, %v1103
          %v1105 = vsel %vm1080, %v1100, 0.0
          %v1106 = vadd.f32 %v1104, %v1105
          %v1107 = vsel %vm1080, %v1101, 0.0
          %v1108 = vadd.f32 %v1106, %v1107
          %v1109 = vrot.slane %v1108, 4
          %v1110 = vadd.f32 %v1108, %v1109
          %v1111 = vrot.slane %v1110, 2
          %v1112 = vadd.f32 %v1110, %v1111
          %v1113 = vrot.slane %v1112, 1
          %v1114 = vadd.f32 %v1112, %v1113
          %v1115 = vadd.f32 %v1097, %v1114
          %1116 = vst.msk [vmem:[#allocation4] sm:$0x1] %vm1095, %v1115
          %v1117 = vpack.c.bf16 %v1058, %v1057
          %v1118 = vpack.c.bf16 %v1060, %v1059
          %s1119 = sshra.s32 %s356, 4
          %s1120 = sand.u32 %s356, 15
          %s1121 = smul.addr %s1119, 8
          %s1122 = scalar_lea.vmem [#allocation2], %s1121
          %1123 = vst.msk [vmem:[%s1122] sm:$0xff] %vm1080, %v1117
          %1124 = vst.msk [vmem:[%s1122 + $0x8] sm:$0xff] %vm1080, %v1118
        $region56: #{tpu_custom_call.1} parent=47 // pred_fallthru
          _
        %p1125 = scmp.eq.s32.totalorder %s25, 1
        // Predicated region
        $region57: #{tpu_custom_call.1} parent=47 // pred_check
          %p1126 = pneg %p1125
        $region58: #{tpu_custom_call.1} parent=47 // pred_check_branch
          %1128 = sbr.rel (%p1126) target = $region60
        $region59: #{tpu_custom_call.1} parent=47 // pred_region
          %v1129 = vld [vmem:[#allocation3] sm:$0x1]
          %v1130 = vmul.f32 %v1129, 0.01
          %v1131 = vld [vmem:[#allocation4] sm:$0x1]
          %v1132 = vmul.f32 %v1131, 0.01
          %v1133 = vmul.f32 %v1130, %v1130
          %v1134 = vsub.f32 %v1132, %v1133
          %v1135 = vadd.f32 %v1134, 1e-05
          %v1136 = vrsqrt.pop %v1135
          %s1137 = sshra.s32 %s356, 4
          %s1138 = sand.u32 %s356, 15
          %s1139 = smul.addr %s1137, 8
          %s1140 = scalar_lea.vmem [#allocation2], %s1139
          %v1141 = vld [vmem:[%s1140] sm:$0xff]
          %v1142 = vld [vmem:[%s1140 + $0x8] sm:$0xff]
          %v1143 = vunpack.c.l.bf16 %v1141
          %v1144 = vunpack.c.h.bf16 %v1141
          %v1145 = vunpack.c.l.bf16 %v1142
          %v1146 = vunpack.c.h.bf16 %v1142
          %v1148 = vlaneseq
          %v1149 = vshrl.u32 %v1148, 7
          %v1150 = vsub.s32 0, %v1149
          %v1151 = vrot.slane %v1130, %v1150
          %v1153 = vsub.f32 %v1143, %v1151
          %v1154 = vsub.f32 %v1144, %v1151
          %v1155 = vsub.f32 %v1145, %v1151
          %v1156 = vsub.f32 %v1146, %v1151
          %v1158 = vlaneseq
          %v1159 = vshrl.u32 %v1158, 7
          %v1160 = vsub.s32 0, %v1159
          %v1161 = vrot.slane %v1136, %v1160
          %v1163 = vmul.f32 %v1153, %v1161
          %v1164 = vmul.f32 %v1154, %v1161
          %v1165 = vmul.f32 %v1155, %v1161
          %v1166 = vmul.f32 %v1156, %v1161
          %v1167 = vld [vmem:[%s3] sm:$0x1]
          %v1169 = vlaneseq
          %v1170 = vshrl.u32 %v1169, 7
          %v1171 = vsub.s32 0, %v1170
          %v1172 = vrot.slane %v1167, %v1171
          %v1174 = vmul.f32 %v1163, %v1172
          %v1175 = vmul.f32 %v1164, %v1172
          %v1176 = vmul.f32 %v1165, %v1172
          %v1177 = vmul.f32 %v1166, %v1172
          %v1178 = vld [vmem:[%s4] sm:$0x1]
          %v1180 = vlaneseq
          %v1181 = vshrl.u32 %v1180, 7
          %v1182 = vsub.s32 0, %v1181
          %v1183 = vrot.slane %v1178, %v1182
          %v1185 = vadd.f32 %v1174, %v1183
          %v1186 = vadd.f32 %v1175, %v1183
          %v1187 = vadd.f32 %v1176, %v1183
          %v1188 = vadd.f32 %v1177, %v1183
          %v1189 = vmax.f32 %v1185, 0.0
          %v1190 = vmax.f32 %v1186, 0.0
          %v1191 = vmax.f32 %v1187, 0.0
          %v1192 = vmax.f32 %v1188, 0.0
          %v1193 = vpack.c.bf16 %v1190, %v1189
          %v1194 = vpack.c.bf16 %v1192, %v1191
          %v1195 = vld [vmem:[%s5] sm:$0xf]
          %v1196 = vld [vmem:[%s5 + $0x4] sm:$0xf]
          %v1197 = vld [vmem:[%s5 + $0x8] sm:$0xf]
          %v1198 = vld [vmem:[%s5 + $0xc] sm:$0xf]
          %v1199 = vld [vmem:[%s6] sm:$0x1]
          %v1201 = vlaneseq
          %v1202 = vshrl.u32 %v1201, 7
          %v1203 = vsub.s32 0, %v1202
          %v1204 = vrot.slane %v1199, %v1203
          %v1210 = vunpack.c.l.b16 %v1195
          %v1211 = vunpack.c.l.b16 %v1196
          %v1212 = vunpack.c.l.b16 %v1197
          %v1213 = vunpack.c.l.b16 %v1198
          %v1214 = vpack.c.b16 %v1211, %v1210
          %v1215 = vpack.c.b16 %v1213, %v1212
          %vm1218 = vcmask 261120
          %v1220 = vsel %vm1218, %v1193, 0
          %v1223 = vsel %vm1218, %v1194, 0
          %1225 = vmatprep.subr.bf16.mxu0 0
          %1226 = vmatpush1.bf16.msra.mxu0 %v1214
          %1227 = vmatprep.subr.bf16.mxu0 0
          %1228 = vmatpush1.bf16.msra.mxu0 %v1215
          %1229 = vmatprep.subr.bf16.mxu0 0
          %1230 = vmatpush1.bf16.msra.mxu0 0
          %1231 = vmatprep.subr.bf16.mxu0 0
          %1232 = vmatpush1.bf16.msra.mxu0 0
          %1233 = vmatprep.subr.bf16.mxu0 0
          %1234 = vmatpush1.bf16.msra.mxu0 0
          %1235 = vmatprep.subr.bf16.mxu0 0
          %1236 = vmatpush1.bf16.msra.mxu0 0
          %1237 = vmatprep.subr.bf16.mxu0 0
          %1238 = vmatpush1.bf16.msra.mxu0 0
          %1239 = vmatprep.subr.bf16.mxu0 0
          %1240 = vmatpush1.bf16.msra.mxu0 0
          %1241 = vmatprep.subr.bf16.mxu0 0
          %1242 = vmatpush1.bf16.msra.mxu0 0
          %1243 = vmatprep.subr.bf16.mxu0 0
          %1244 = vmatpush1.bf16.msra.mxu0 0
          %1245 = vmatprep.subr.bf16.mxu0 0
          %1246 = vmatpush1.bf16.msra.mxu0 0
          %1247 = vmatprep.subr.bf16.mxu0 0
          %1248 = vmatpush1.bf16.msra.mxu0 0
          %1249 = vmatprep.subr.bf16.mxu0 0
          %1250 = vmatpush1.bf16.msra.mxu0 0
          %1251 = vmatprep.subr.bf16.mxu0 0
          %1252 = vmatpush1.bf16.msra.mxu0 0
          %1253 = vmatprep.subr.bf16.mxu0 0
          %1254 = vmatpush1.bf16.msra.mxu0 0
          %1255 = vmatprep.subr.bf16.mxu0 0
          %1256 = vmatpush1.bf16.msra.mxu0 0
          %1257 = vmatprep.mubr.bf16.mxu0 0
          %1258 = vmatmul.mubr.bf16.gmra.mrb[0].mxu0 %v1220
          %v1259 = vpop.f32.mrb[0].mxu0
          %v1260 = vadd.f32 %v1204, %v1259
          %v1261 = vpop.f32.mrb[0].mxu0
          %v1262 = vpop.f32.mrb[0].mxu0
          %v1263 = vadd.f32 %v1204, %v1262
          %v1264 = vpop.f32.mrb[0].mxu0
          %1265 = vmatprep.mubr.bf16.mxu0 0
          %1266 = vmatmul.mubr.bf16.gmra.mrb[0].mxu0 %v1223
          %v1267 = vpop.f32.mrb[0].mxu0
          %v1268 = vadd.f32 %v1204, %v1267
          %v1269 = vpop.f32.mrb[0].mxu0
          %v1270 = vpop.f32.mrb[0].mxu0
          %v1271 = vadd.f32 %v1204, %v1270
          %v1272 = vpop.f32.mrb[0].mxu0
          %1273 = vdwg.mxu0
          %v1274 = vpack.c.bf16 %v1263, %v1260
          %v1275 = vpack.c.bf16 %v1271, %v1268
          %v1278 = vunpack.c.l.b16 %v1274
          %v1279 = vunpack.c.h.b16 %v1274
          %v1280 = vunpack.c.l.b16 %v1275
          %v1281 = vunpack.c.h.b16 %v1275
          %v1282 = vpack.c.b16 %v1278, %v1278
          %v1283 = vpack.c.b16 %v1279, %v1279
          %v1284 = vpack.c.b16 %v1280, %v1280
          %v1285 = vpack.c.b16 %v1281, %v1281
          %1290 = vst [vmem:[%s323] sm:$0xf] %v1282
          %1291 = vst [vmem:[%s323 + $0x4] sm:$0xf] %v1283
          %1292 = vst [vmem:[%s323 + $0x8] sm:$0xf] %v1284
          %1293 = vst [vmem:[%s323 + $0xc] sm:$0xf] %v1285
        $region60: #{tpu_custom_call.1} parent=47 // pred_fallthru
          _
        %s1294 = sand.u32 %s203, 1
        %s1295 = scalar_lea.sflag [#allocation6], %s1294
        %s1296 = sand.u32 %s203, 1
        %s1297 = smul.addr %s1296, 16
        %s1298 = scalar_lea.vmem [#allocation5], %s1297
        // Predicated region
        $region61: #{tpu_custom_call.1} parent=47 // pred_check
          %p1299 = pneg %p213
        $region62: #{tpu_custom_call.1} parent=47 // pred_check_branch
          %1301 = sbr.rel (%p1299) target = $region64
        $region63: #{tpu_custom_call.1} parent=47 // pred_region
          %s1302 = smul.u32 %s25, %s26
          %s1303 = smul.u32 4, %s1302
          %s1304 = ssub.s32 13, %s1303
          %p1305 = scmp.lt.s32.totalorder %s1304, 4
          %s1306 = scalar_select %p1305, %s1304, 4
          %s1307 = smul.u32 64, %s1306
          %s1309 = ssub.s32 256, %s1307
          %1310 = vsyncadd %s1295, %s1309
          %p1311 = scmp.ne.s32.totalorder 0, %s1307
          %s1312 = smul.addr %s1303, 64
          %s1313 = scalar_lea.hbm %s7, %s1312
          %s1314 = smul.u32 4, %s1306
          %s1315 = sshll.u32 %s1298, 4
          %s1316 = int_to_ptr.vmem [resolvable:$true] %s1315
          %s1317 = sshll.u32 %s1314, 4
          %1321 = dma.vmem_to_hbm [thread:$0]  (%p1311), %s1316, %s1317, %s1313, %s1295, 64, 64, 4
        $region64: #{tpu_custom_call.1} parent=47 // pred_fallthru
          _
      $region48: #{tpu_custom_call.1} parent=5 // pred_fallthru
        _
      %p1322 = scmp.le.s32.totalorder 2, %s16
      // Predicated region
      $region65: #{tpu_custom_call.1} parent=5 // pred_check
        %p1323 = pneg %p1322
      $region66: #{tpu_custom_call.1} parent=5 // pred_check_branch
        %1325 = sbr.rel (%p1323) target = $region68
      $region67: #{tpu_custom_call.1} parent=5 // pred_region
        %s1326 = ssub.s32 %s16, 2
        // Predicated region
        $region69: #{tpu_custom_call.1} parent=67 // pred_check
          %p1327 = pneg %p219
        $region70: #{tpu_custom_call.1} parent=67 // pred_check_branch
          %1329 = sbr.rel (%p1327) target = $region72
        $region71: #{tpu_custom_call.1} parent=67 // pred_region
          %s1330 = sand.u32 %s204, 1
          %s1331 = scalar_lea.sflag [#allocation6], %s1330
          %s1332 = sand.u32 %s204, 1
          %s1333 = smul.addr %s1332, 16
          %s1334 = scalar_lea.vmem [#allocation5], %s1333
          %1335 = dma.done %s1331, 256
        $region72: #{tpu_custom_call.1} parent=67 // pred_fallthru
          _
      $region68: #{tpu_custom_call.1} parent=5 // pred_fallthru
        _
    $region6: #{tpu_custom_call.1} parent=1 // loop_footer
      %s20 = sadd.s32 1, %s16
    $region7: #{tpu_custom_call.1} parent=1 // loop_footer_branch
      %15 = sbr.rel target = $region3
    $region8: #{tpu_custom_call.1} parent=1 // loop_exit
      _
    %1336 = vsyncpa [#allocation6], 1
    %s1337 = scalar_lea.sflag [#allocation6], 1
    %1338 = vsyncpa %s1337, 1

</llo_original>
